<compile_context>
chip_gen: v5e
topology: v5e:2x2
jax: 0.10.0
libtpu: 0.0.40
codegen_flags: <defaults>
</compile_context>

<pallas_src>
import jax
import jax.numpy as jnp
from jax.experimental import pallas as pl
from jax.experimental.pallas import tpu as pltpu

# ----- small ViT config (scaled-down vit_small-style model) -----
BATCH = 2
IN_CHANS = 3
IMG_SIZE = 16
PATCH = 8
EMBED = 32
DEPTH = 2
NUM_HEADS = 4
HEAD_DIM = EMBED // NUM_HEADS
MLP_HIDDEN = 4 * EMBED
NUM_CLASSES = 10
NUM_PATCHES = (IMG_SIZE // PATCH) ** 2          # 4
NUM_TOKENS = NUM_PATCHES + 1                    # 5 (+ cls token)
PATCH_DIM = IN_CHANS * PATCH * PATCH            # 192
LN_EPS = 1e-6
ATTN_SCALE = HEAD_DIM ** -0.5

# 1 = whole batch in one grid step (best on single-TC v5e/v6e).
# On v7x set to 2 so each TensorCore gets one image (dimension_semantics is
# already "parallel"); everything below is written generically over chunks.
BATCH_CHUNKS = 1
CHUNK_B = BATCH // BATCH_CHUNKS
TOKENS = CHUNK_B * NUM_TOKENS                   # tokens processed per grid step
HT = NUM_HEADS * TOKENS                         # block-column attention width
OUT_PAD = 128                                   # lane-dense padded logits width
NEG_INF = -1e30


# ----------------------------- in-kernel helpers -----------------------------

def _ln(x, g, b):
    """LayerNorm over the last dim; g/b broadcast from (1, D)."""
    mean = jnp.mean(x, axis=-1, keepdims=True)
    xc = x - mean
    var = jnp.mean(xc * xc, axis=-1, keepdims=True)
    return xc * jax.lax.rsqrt(var + LN_EPS) * g + b


def _gelu_tanh(x):
    # TODO(synk): timm's exact erf-GELU is replaced by the tanh approximation
    # in-kernel (Mosaic erf lowering is not guaranteed); max rel. deviation ~1e-3.
    c = jnp.float32(0.7978845608028654)  # sqrt(2/pi)
    return 0.5 * x * (1.0 + jnp.tanh(c * (x + 0.044715 * x * x * x)))


# ----------------------------- fused ViT kernel -----------------------------

def _vit_kernel(patches_ref, tokbias_ref, patch_w_ref,
                qkv_w_ref, qkv_b_ref, proj_w_ref,
                fc1_w_ref, fc1_b_ref, fc2_w_ref,
                vecs_ref, finalnorm_ref, head_w_ref, head_b_ref,
                headmask_ref, attnbias_ref, blockones_ref,
                out_ref):
    headmask = headmask_ref[...]      # (HT, E)  1 where column belongs to that head
    attnbias = attnbias_ref[...]      # (T, HT)  0 same-image, -1e30 cross-image
    blockones = blockones_ref[...]    # (HT, HT) block-diagonal ones (per-head groups)

    # ---- patch embedding; cls token / pos embed / conv bias folded into tokbias ----
    xt = jnp.dot(patches_ref[0], patch_w_ref[...],
                 preferred_element_type=jnp.float32) + tokbias_ref[0]   # (T, E)

    # ---- transformer blocks (statically unrolled) ----
    for d in range(DEPTH):
        vd = vecs_ref[d]              # (6, E): [n1g, n1b, n2g, n2b, proj_b, fc2_b]

        # --- attention: all heads and all images in ONE score/softmax/PV pass ---
        h = _ln(xt, vd[0:1], vd[1:2])
        qkv = jnp.dot(h, qkv_w_ref[d],
                      preferred_element_type=jnp.float32) + qkv_b_ref[d]  # (T, 3E)
        q = qkv[:, 0:EMBED]                     # attention scale pre-folded into W_q/b_q
        k = qkv[:, EMBED:2 * EMBED]
        v = qkv[:, 2 * EMBED:3 * EMBED]

        # Head-masked replication: row block h of K_big/V_big only carries head h's
        # columns, so a single full-E contraction yields per-head scores/outputs.
        k_big = jnp.concatenate([k] * NUM_HEADS, axis=0) * headmask      # (HT, E)
        v_big = jnp.concatenate([v] * NUM_HEADS, axis=0) * headmask      # (HT, E)

        s = jax.lax.dot_general(q, k_big, (((1,), (1,)), ((), ())),
                                preferred_element_type=jnp.float32) + attnbias  # (T, HT)
        s = s - jnp.max(s, axis=-1, keepdims=True)   # one reduce chain for all heads
        p = jnp.exp(s)
        denom = jnp.dot(p, blockones,
                        preferred_element_type=jnp.float32)  # per-(row, head) sums, broadcast
        p = p / denom                                         # exact divide (fidelity)
        o = jnp.dot(p, v_big, preferred_element_type=jnp.float32)        # (T, E) heads concat
        o = jnp.dot(o, proj_w_ref[d],
                    preferred_element_type=jnp.float32) + vd[4:5]
        xt = xt + o                                   # residual

        # --- MLP ---
        h = _ln(xt, vd[2:3], vd[3:4])
        h = jnp.dot(h, fc1_w_ref[d],
                    preferred_element_type=jnp.float32) + fc1_b_ref[d]
        h = _gelu_tanh(h)
        h = jnp.dot(h, fc2_w_ref[d],
                    preferred_element_type=jnp.float32) + vd[5:6]
        xt = xt + h                                   # residual

    # ---- final LayerNorm only on the cls rows, lane-dense (128-wide) head store ----
    fn = finalnorm_ref[...]                           # (2, E): [gamma, beta]
    cls = jnp.concatenate([xt[i * NUM_TOKENS:i * NUM_TOKENS + 1, :]
                           for i in range(CHUNK_B)], axis=0)              # (CB, E)
    cls = _ln(cls, fn[0:1], fn[1:2])
    out_ref[0] = (jnp.dot(cls, head_w_ref[...],
                          preferred_element_type=jnp.float32) + head_b_ref[...])


# ----------------------------- wrapper (Pallas) -----------------------------

def _cost_estimate(operands):
    per_block = (2 * TOKENS * EMBED * 3 * EMBED        # qkv
                 + 2 * TOKENS * EMBED * HT             # scores
                 + 2 * TOKENS * HT * HT                # group sums
                 + 2 * TOKENS * HT * EMBED             # p @ v
                 + 2 * TOKENS * EMBED * EMBED          # proj
                 + 2 * TOKENS * EMBED * MLP_HIDDEN     # fc1
                 + 2 * TOKENS * MLP_HIDDEN * EMBED)    # fc2
    flops = BATCH_CHUNKS * (2 * TOKENS * PATCH_DIM * EMBED
                            + DEPTH * per_block
                            + 2 * CHUNK_B * EMBED * OUT_PAD)
    trans = BATCH_CHUNKS * DEPTH * (TOKENS * HT + TOKENS * MLP_HIDDEN)
    bytes_accessed = (sum(int(a.size) * a.dtype.itemsize for a in operands)
                      + BATCH_CHUNKS * CHUNK_B * OUT_PAD * 4)
    return pl.CostEstimate(flops=flops, transcendentals=trans,
                           bytes_accessed=bytes_accessed)


def vit_forward(params, x):
    B, C, H, W = x.shape
    hp, wp = H // PATCH, W // PATCH

    # Patch extraction (pure layout glue; Conv2d(stride=patch) becomes a matmul).
    patches = (x.reshape(B, C, hp, PATCH, wp, PATCH)
                 .transpose(0, 2, 4, 1, 3, 5)
                 .reshape(B, hp * wp, PATCH_DIM))
    # Prepend a zero "patch" row per image so the same matmul produces the cls row;
    # cls token, positional embedding and the conv bias are folded into one
    # per-token additive bias.
    patches_ext = jnp.concatenate(
        [jnp.zeros((B, 1, PATCH_DIM), patches.dtype), patches], axis=1)
    patches_ck = patches_ext.reshape(BATCH_CHUNKS, TOKENS, PATCH_DIM)

    pos = params["pos_embed"][0]                                          # (NTOK, E)
    tokbias_img = jnp.concatenate(
        [params["cls_token"][0] + pos[0:1],
         pos[1:] + params["patch_b"][None, :]], axis=0)                   # (NTOK, E)
    tokbias_ck = jnp.broadcast_to(
        tokbias_img[None], (B, NUM_TOKENS, EMBED)).reshape(BATCH_CHUNKS, TOKENS, EMBED)

    blocks = params["blocks"]
    stk = lambda key: jnp.stack([blk[key] for blk in blocks], axis=0)

    # Fold the attention scale into the Q columns of the QKV projection (free on host).
    qkv_w = stk("qkv_w")
    qkv_b = stk("qkv_b")
    qkv_w = jnp.concatenate([qkv_w[..., :EMBED] * ATTN_SCALE, qkv_w[..., EMBED:]], axis=-1)
    qkv_b = jnp.concatenate([qkv_b[..., :EMBED] * ATTN_SCALE, qkv_b[..., EMBED:]], axis=-1)
    qkv_b = qkv_b[:, None, :]                                             # (D, 1, 3E)

    proj_w = stk("proj_w")
    fc1_w, fc1_b = stk("fc1_w"), stk("fc1_b")[:, None, :]
    fc2_w = stk("fc2_w")

    # All per-depth (E,)-wide vectors packed into one slab: [n1g, n1b, n2g, n2b, proj_b, fc2_b]
    vecs = jnp.stack([stk("norm1_g"), stk("norm1_b"), stk("norm2_g"), stk("norm2_b"),
                      stk("proj_b"), stk("fc2_b")], axis=1)               # (D, 6, E)
    finalnorm = jnp.stack([params["norm_g"], params["norm_b"]], axis=0)   # (2, E)

    # Lane-dense head: pad classifier to 128 output lanes, slice back after the call.
    head_w_pad = jnp.zeros((EMBED, OUT_PAD), jnp.float32).at[:, :NUM_CLASSES].set(params["head_w"])
    head_b_pad = jnp.zeros((1, OUT_PAD), jnp.float32).at[0, :NUM_CLASSES].set(params["head_b"])

    # Attention constants for the block-column multi-head formulation.
    col = jnp.arange(HT)
    head_of_col = col // TOKENS
    t2_of_col = col % TOKENS
    img_of_tok = jnp.arange(TOKENS) // NUM_TOKENS
    headmask = (head_of_col[:, None] ==
                (jnp.arange(EMBED) // HEAD_DIM)[None, :]).astype(jnp.float32)   # (HT, E)
    attnbias = jnp.where(img_of_tok[:, None] == img_of_tok[t2_of_col][None, :],
                         0.0, NEG_INF).astype(jnp.float32)                       # (T, HT)
    blockones = (head_of_col[:, None] == head_of_col[None, :]).astype(jnp.float32)  # (HT, HT)

    operands = (patches_ck, tokbias_ck, params["patch_w"],
                qkv_w, qkv_b, proj_w, fc1_w, fc1_b, fc2_w,
                vecs, finalnorm, head_w_pad, head_b_pad,
                headmask, attnbias, blockones)

    def _const_spec(a):
        zeros = (0,) * a.ndim
        return pl.BlockSpec(a.shape, lambda c, _z=zeros: _z)

    in_specs = [pl.BlockSpec((1, TOKENS, PATCH_DIM), lambda c: (c, 0, 0)),
                pl.BlockSpec((1, TOKENS, EMBED), lambda c: (c, 0, 0))]
    in_specs += [_const_spec(a) for a in operands[2:]]

    out = pl.pallas_call(
        _vit_kernel,
        grid=(BATCH_CHUNKS,),
        in_specs=in_specs,
        out_specs=pl.BlockSpec((1, CHUNK_B, OUT_PAD), lambda c: (c, 0, 0)),
        out_shape=jax.ShapeDtypeStruct((BATCH_CHUNKS, CHUNK_B, OUT_PAD), jnp.float32),
        compiler_params=pltpu.CompilerParams(
            dimension_semantics=("parallel",)),
        cost_estimate=_cost_estimate(operands),
    )(*operands)
    return out.reshape(BATCH, OUT_PAD)[:, :NUM_CLASSES]


# ----------------------------- pure-JAX reference -----------------------------

def _layer_norm_ref(x, g, b):
    mean = jnp.mean(x, axis=-1, keepdims=True)
    xc = x - mean
    var = jnp.mean(xc * xc, axis=-1, keepdims=True)
    return xc * jax.lax.rsqrt(var + LN_EPS) * g + b


def vit_forward_ref(params, x):
    B, C, H, W = x.shape
    hp, wp = H // PATCH, W // PATCH
    patches = (x.reshape(B, C, hp, PATCH, wp, PATCH)
                 .transpose(0, 2, 4, 1, 3, 5)
                 .reshape(B, hp * wp, PATCH_DIM))
    tok = patches @ params["patch_w"] + params["patch_b"]
    cls = jnp.broadcast_to(params["cls_token"], (B, 1, EMBED))
    xt = jnp.concatenate([cls, tok], axis=1) + params["pos_embed"]
    ntok = xt.shape[1]
    for blk in params["blocks"]:
        h = _layer_norm_ref(xt, blk["norm1_g"], blk["norm1_b"])
        qkv = h @ blk["qkv_w"] + blk["qkv_b"]
        qkv = qkv.reshape(B, ntok, 3, NUM_HEADS, HEAD_DIM).transpose(2, 0, 3, 1, 4)
        q, k, v = qkv[0], qkv[1], qkv[2]
        s = jnp.einsum("bhnd,bhmd->bhnm", q, k) * ATTN_SCALE
        s = s - jnp.max(s, axis=-1, keepdims=True)
        p = jnp.exp(s)
        p = p / jnp.sum(p, axis=-1, keepdims=True)
        o = jnp.einsum("bhnm,bhmd->bhnd", p, v)
        o = o.transpose(0, 2, 1, 3).reshape(B, ntok, EMBED)
        xt = xt + (o @ blk["proj_w"] + blk["proj_b"])
        h = _layer_norm_ref(xt, blk["norm2_g"], blk["norm2_b"])
        h = _gelu_tanh(h @ blk["fc1_w"] + blk["fc1_b"])
        xt = xt + (h @ blk["fc2_w"] + blk["fc2_b"])
    xt = _layer_norm_ref(xt, params["norm_g"], params["norm_b"])
    return xt[:, 0] @ params["head_w"] + params["head_b"]


# ----------------------------- deterministic parameter init -----------------------------

def init_params(key):
    ks = jax.random.split(key, 8 + DEPTH)

    def n(k, shape, std=0.02):
        return jax.random.normal(k, shape, jnp.float32) * std

    params = {
        "patch_w": n(ks[0], (PATCH_DIM, EMBED)),
        "patch_b": n(ks[1], (EMBED,)),
        "cls_token": n(ks[2], (1, 1, EMBED)),
        "pos_embed": n(ks[3], (1, NUM_TOKENS, EMBED)),
        "norm_g": jnp.ones((EMBED,), jnp.float32),
        "norm_b": jnp.zeros((EMBED,), jnp.float32),
        "head_w": n(ks[4], (EMBED, NUM_CLASSES)),
        "head_b": jnp.zeros((NUM_CLASSES,), jnp.float32),
        "blocks": [],
    }
    for d in range(DEPTH):
        bk = jax.random.split(ks[8 + d], 8)
        params["blocks"].append(
            {
                "norm1_g": jnp.ones((EMBED,), jnp.float32),
                "norm1_b": jnp.zeros((EMBED,), jnp.float32),
                "qkv_w": n(bk[0], (EMBED, 3 * EMBED)),
                "qkv_b": n(bk[1], (3 * EMBED,)),
                "proj_w": n(bk[2], (EMBED, EMBED)),
                "proj_b": n(bk[3], (EMBED,)),
                "norm2_g": jnp.ones((EMBED,), jnp.float32),
                "norm2_b": jnp.zeros((EMBED,), jnp.float32),
                "fc1_w": n(bk[4], (EMBED, MLP_HIDDEN)),
                "fc1_b": n(bk[5], (MLP_HIDDEN,)),
                "fc2_w": n(bk[6], (MLP_HIDDEN, EMBED)),
                "fc2_b": n(bk[7], (EMBED,)),
            }
        )
    return params


if __name__ == "__main__":
    key = jax.random.PRNGKey(0)
    pkey, xkey = jax.random.split(key)
    params = init_params(pkey)
    x = jax.random.normal(xkey, (BATCH, IN_CHANS, IMG_SIZE, IMG_SIZE), jnp.float32)

    logits = jax.block_until_ready(jax.jit(vit_forward)(params, x))
    ref = vit_forward_ref(params, x)

    assert logits.shape == (BATCH, NUM_CLASSES), logits.shape
    assert bool(jnp.all(jnp.isfinite(logits)))
    err = float(jnp.max(jnp.abs(logits - ref)))
    assert err < 1e-2, f"max abs err = {err}"
    print("KERNEL_OK")
</pallas_src>

<mosaic_0001>
module attributes {stable_mosaic.version = 11 : i64} {
  func.func @_vit_kernel(%arg0: i32, %arg1: memref<1x10x192xf32, #tpu.memory_space<vmem>>, %arg2: memref<1x10x32xf32, #tpu.memory_space<vmem>>, %arg3: memref<192x32xf32, #tpu.memory_space<vmem>>, %arg4: memref<2x32x96xf32, #tpu.memory_space<vmem>>, %arg5: memref<2x1x96xf32, #tpu.memory_space<vmem>>, %arg6: memref<2x32x32xf32, #tpu.memory_space<vmem>>, %arg7: memref<2x32x128xf32, #tpu.memory_space<vmem>>, %arg8: memref<2x1x128xf32, #tpu.memory_space<vmem>>, %arg9: memref<2x128x32xf32, #tpu.memory_space<vmem>>, %arg10: memref<2x6x32xf32, #tpu.memory_space<vmem>>, %arg11: memref<2x32xf32, #tpu.memory_space<vmem>>, %arg12: memref<32x128xf32, #tpu.memory_space<vmem>>, %arg13: memref<1x128xf32, #tpu.memory_space<vmem>>, %arg14: memref<40x32xf32, #tpu.memory_space<vmem>>, %arg15: memref<10x40xf32, #tpu.memory_space<vmem>>, %arg16: memref<40x40xf32, #tpu.memory_space<vmem>>, %arg17: memref<1x2x128xf32, #tpu.memory_space<vmem>>) attributes {dimension_semantics = [#tpu.dimension_semantics<parallel>], iteration_bounds = array<i64: 1>, scalar_prefetch = 0 : i64, scratch_operands = 0 : i64, tpu.core_type = #tpu.core_type<tc>, window_params = [{transform_indices = @transform_0, window_bounds = array<i64: 1, 10, 192>}, {transform_indices = @transform_1, window_bounds = array<i64: 1, 10, 32>}, {pipeline_mode = #tpu.pipeline_mode<synchronous>, transform_indices = @transform_2, window_bounds = array<i64: 192, 32>}, {pipeline_mode = #tpu.pipeline_mode<synchronous>, transform_indices = @transform_3, window_bounds = array<i64: 2, 32, 96>}, {pipeline_mode = #tpu.pipeline_mode<synchronous>, transform_indices = @transform_4, window_bounds = array<i64: 2, 1, 96>}, {pipeline_mode = #tpu.pipeline_mode<synchronous>, transform_indices = @transform_5, window_bounds = array<i64: 2, 32, 32>}, {pipeline_mode = #tpu.pipeline_mode<synchronous>, transform_indices = @transform_6, window_bounds = array<i64: 2, 32, 128>}, {pipeline_mode = #tpu.pipeline_mode<synchronous>, transform_indices = @transform_7, window_bounds = array<i64: 2, 1, 128>}, {pipeline_mode = #tpu.pipeline_mode<synchronous>, transform_indices = @transform_8, window_bounds = array<i64: 2, 128, 32>}, {pipeline_mode = #tpu.pipeline_mode<synchronous>, transform_indices = @transform_9, window_bounds = array<i64: 2, 6, 32>}, {pipeline_mode = #tpu.pipeline_mode<synchronous>, transform_indices = @transform_10, window_bounds = array<i64: 2, 32>}, {pipeline_mode = #tpu.pipeline_mode<synchronous>, transform_indices = @transform_11, window_bounds = array<i64: 32, 128>}, {pipeline_mode = #tpu.pipeline_mode<synchronous>, transform_indices = @transform_12, window_bounds = array<i64: 1, 128>}, {pipeline_mode = #tpu.pipeline_mode<synchronous>, transform_indices = @transform_13, window_bounds = array<i64: 40, 32>}, {pipeline_mode = #tpu.pipeline_mode<synchronous>, transform_indices = @transform_14, window_bounds = array<i64: 10, 40>}, {pipeline_mode = #tpu.pipeline_mode<synchronous>, transform_indices = @transform_15, window_bounds = array<i64: 40, 40>}, {transform_indices = @transform_16, window_bounds = array<i64: 1, 2, 128>}]} {
    %c0 = arith.constant 0 : index
    %c0_0 = arith.constant 0 : index
    %0 = vector.load %arg14[%c0, %c0_0] : memref<40x32xf32, #tpu.memory_space<vmem>>, vector<40x32xf32>
    %c0_1 = arith.constant 0 : index
    %c0_2 = arith.constant 0 : index
    %1 = vector.load %arg15[%c0_1, %c0_2] : memref<10x40xf32, #tpu.memory_space<vmem>>, vector<10x40xf32>
    %c0_3 = arith.constant 0 : index
    %c0_4 = arith.constant 0 : index
    %2 = vector.load %arg16[%c0_3, %c0_4] : memref<40x40xf32, #tpu.memory_space<vmem>>, vector<40x40xf32>
    %c0_5 = arith.constant 0 : index
    %c0_6 = arith.constant 0 : index
    %c0_7 = arith.constant 0 : index
    %3 = vector.load %arg1[%c0_5, %c0_6, %c0_7] : memref<1x10x192xf32, #tpu.memory_space<vmem>>, vector<1x10x192xf32>
    %4 = vector.shape_cast %3 : vector<1x10x192xf32> to vector<10x192xf32>
    %c0_8 = arith.constant 0 : index
    %c0_9 = arith.constant 0 : index
    %5 = vector.load %arg3[%c0_8, %c0_9] : memref<192x32xf32, #tpu.memory_space<vmem>>, vector<192x32xf32>
    %cst = arith.constant dense<0.000000e+00> : vector<10x32xf32>
    %6 = tpu.matmul %4, %5, %cst {dimension_numbers = #tpu.dot_dimension_numbers<[1], [0], [0], [1], [0, 0, 1, 1], [], []>} : vector<10x192xf32>, vector<192x32xf32>, vector<10x32xf32> -> vector<10x32xf32>
    %c0_10 = arith.constant 0 : index
    %c0_11 = arith.constant 0 : index
    %c0_12 = arith.constant 0 : index
    %7 = vector.load %arg2[%c0_10, %c0_11, %c0_12] : memref<1x10x32xf32, #tpu.memory_space<vmem>>, vector<1x10x32xf32>
    %8 = vector.shape_cast %7 : vector<1x10x32xf32> to vector<10x32xf32>
    %9 = arith.addf %6, %8 : vector<10x32xf32>
    %c0_13 = arith.constant 0 : index
    %c0_14 = arith.constant 0 : index
    %c0_15 = arith.constant 0 : index
    %10 = vector.load %arg10[%c0_13, %c0_14, %c0_15] : memref<2x6x32xf32, #tpu.memory_space<vmem>>, vector<1x6x32xf32>
    %11 = vector.shape_cast %10 : vector<1x6x32xf32> to vector<6x32xf32>
    %12 = vector.extract_strided_slice %11 {offsets = [0, 0], sizes = [1, 32], strides = [1, 1]} : vector<6x32xf32> to vector<1x32xf32>
    %13 = vector.extract_strided_slice %11 {offsets = [1, 0], sizes = [1, 32], strides = [1, 1]} : vector<6x32xf32> to vector<1x32xf32>
    %cst_16 = arith.constant dense<0.000000e+00> : vector<10xf32>
    %14 = vector.multi_reduction <add>, %9, %cst_16 [1] : vector<10x32xf32> to vector<10xf32>
    %15 = vector.shape_cast %14 : vector<10xf32> to vector<10x1xf32>
    %cst_17 = arith.constant 3.200000e+01 : f32
    %16 = vector.broadcast %cst_17 : f32 to vector<10x1xf32>
    %17 = arith.divf %15, %16 : vector<10x1xf32>
    %18 = vector.broadcast %17 : vector<10x1xf32> to vector<10x32xf32>
    %19 = arith.subf %9, %18 : vector<10x32xf32>
    %20 = arith.mulf %19, %19 : vector<10x32xf32>
    %cst_18 = arith.constant dense<0.000000e+00> : vector<10xf32>
    %21 = vector.multi_reduction <add>, %20, %cst_18 [1] : vector<10x32xf32> to vector<10xf32>
    %22 = vector.shape_cast %21 : vector<10xf32> to vector<10x1xf32>
    %cst_19 = arith.constant 3.200000e+01 : f32
    %23 = vector.broadcast %cst_19 : f32 to vector<10x1xf32>
    %24 = arith.divf %22, %23 : vector<10x1xf32>
    %cst_20 = arith.constant 9.99999997E-7 : f32
    %25 = vector.broadcast %cst_20 : f32 to vector<10x1xf32>
    %26 = arith.addf %24, %25 : vector<10x1xf32>
    %27 = math.rsqrt %26 : vector<10x1xf32>
    %28 = vector.broadcast %27 : vector<10x1xf32> to vector<10x32xf32>
    %29 = arith.mulf %19, %28 : vector<10x32xf32>
    %30 = vector.broadcast %12 : vector<1x32xf32> to vector<10x32xf32>
    %31 = arith.mulf %29, %30 : vector<10x32xf32>
    %32 = vector.broadcast %13 : vector<1x32xf32> to vector<10x32xf32>
    %33 = arith.addf %31, %32 : vector<10x32xf32>
    %c0_21 = arith.constant 0 : index
    %c0_22 = arith.constant 0 : index
    %c0_23 = arith.constant 0 : index
    %34 = vector.load %arg4[%c0_21, %c0_22, %c0_23] : memref<2x32x96xf32, #tpu.memory_space<vmem>>, vector<1x32x96xf32>
    %35 = vector.shape_cast %34 : vector<1x32x96xf32> to vector<32x96xf32>
    %cst_24 = arith.constant dense<0.000000e+00> : vector<10x96xf32>
    %36 = tpu.matmul %33, %35, %cst_24 {dimension_numbers = #tpu.dot_dimension_numbers<[1], [0], [0], [1], [0, 0, 1, 1], [], []>} : vector<10x32xf32>, vector<32x96xf32>, vector<10x96xf32> -> vector<10x96xf32>
    %c0_25 = arith.constant 0 : index
    %c0_26 = arith.constant 0 : index
    %c0_27 = arith.constant 0 : index
    %37 = vector.load %arg5[%c0_25, %c0_26, %c0_27] : memref<2x1x96xf32, #tpu.memory_space<vmem>>, vector<1x1x96xf32>
    %38 = vector.shape_cast %37 : vector<1x1x96xf32> to vector<1x96xf32>
    %39 = vector.broadcast %38 : vector<1x96xf32> to vector<10x96xf32>
    %40 = arith.addf %36, %39 : vector<10x96xf32>
    %41 = vector.extract_strided_slice %40 {offsets = [0, 0], sizes = [10, 32], strides = [1, 1]} : vector<10x96xf32> to vector<10x32xf32>
    %42 = vector.extract_strided_slice %40 {offsets = [0, 32], sizes = [10, 32], strides = [1, 1]} : vector<10x96xf32> to vector<10x32xf32>
    %43 = vector.extract_strided_slice %40 {offsets = [0, 64], sizes = [10, 32], strides = [1, 1]} : vector<10x96xf32> to vector<10x32xf32>
    %44 = tpu.concatenate %42, %42, %42, %42 in 0 : vector<10x32xf32>, vector<10x32xf32>, vector<10x32xf32>, vector<10x32xf32> -> vector<40x32xf32>
    %45 = arith.mulf %44, %0 : vector<40x32xf32>
    %46 = tpu.concatenate %43, %43, %43, %43 in 0 : vector<10x32xf32>, vector<10x32xf32>, vector<10x32xf32>, vector<10x32xf32> -> vector<40x32xf32>
    %47 = arith.mulf %46, %0 : vector<40x32xf32>
    %cst_28 = arith.constant dense<0.000000e+00> : vector<10x40xf32>
    %48 = tpu.matmul %41, %45, %cst_28 {dimension_numbers = #tpu.dot_dimension_numbers<[1], [1], [0], [0], [0, 0, 1, 0], [], []>} : vector<10x32xf32>, vector<40x32xf32>, vector<10x40xf32> -> vector<10x40xf32>
    %49 = arith.addf %48, %1 : vector<10x40xf32>
    %cst_29 = arith.constant dense<0xFF800000> : vector<10xf32>
    %50 = vector.multi_reduction <maximumf>, %49, %cst_29 [1] : vector<10x40xf32> to vector<10xf32>
    %51 = vector.shape_cast %50 : vector<10xf32> to vector<10x1xf32>
    %52 = vector.broadcast %51 : vector<10x1xf32> to vector<10x40xf32>
    %53 = arith.subf %49, %52 : vector<10x40xf32>
    %54 = math.exp %53 : vector<10x40xf32>
    %cst_30 = arith.constant dense<0.000000e+00> : vector<10x40xf32>
    %55 = tpu.matmul %54, %2, %cst_30 {dimension_numbers = #tpu.dot_dimension_numbers<[1], [0], [0], [1], [0, 0, 1, 1], [], []>} : vector<10x40xf32>, vector<40x40xf32>, vector<10x40xf32> -> vector<10x40xf32>
    %56 = arith.divf %54, %55 : vector<10x40xf32>
    %cst_31 = arith.constant dense<0.000000e+00> : vector<10x32xf32>
    %57 = tpu.matmul %56, %47, %cst_31 {dimension_numbers = #tpu.dot_dimension_numbers<[1], [0], [0], [1], [0, 0, 1, 1], [], []>} : vector<10x40xf32>, vector<40x32xf32>, vector<10x32xf32> -> vector<10x32xf32>
    %c0_32 = arith.constant 0 : index
    %c0_33 = arith.constant 0 : index
    %c0_34 = arith.constant 0 : index
    %58 = vector.load %arg6[%c0_32, %c0_33, %c0_34] : memref<2x32x32xf32, #tpu.memory_space<vmem>>, vector<1x32x32xf32>
    %59 = vector.shape_cast %58 : vector<1x32x32xf32> to vector<32x32xf32>
    %cst_35 = arith.constant dense<0.000000e+00> : vector<10x32xf32>
    %60 = tpu.matmul %57, %59, %cst_35 {dimension_numbers = #tpu.dot_dimension_numbers<[1], [0], [0], [1], [0, 0, 1, 1], [], []>} : vector<10x32xf32>, vector<32x32xf32>, vector<10x32xf32> -> vector<10x32xf32>
    %61 = vector.extract_strided_slice %11 {offsets = [4, 0], sizes = [1, 32], strides = [1, 1]} : vector<6x32xf32> to vector<1x32xf32>
    %62 = vector.broadcast %61 : vector<1x32xf32> to vector<10x32xf32>
    %63 = arith.addf %60, %62 : vector<10x32xf32>
    %64 = arith.addf %9, %63 : vector<10x32xf32>
    %65 = vector.extract_strided_slice %11 {offsets = [2, 0], sizes = [1, 32], strides = [1, 1]} : vector<6x32xf32> to vector<1x32xf32>
    %66 = vector.extract_strided_slice %11 {offsets = [3, 0], sizes = [1, 32], strides = [1, 1]} : vector<6x32xf32> to vector<1x32xf32>
    %cst_36 = arith.constant dense<0.000000e+00> : vector<10xf32>
    %67 = vector.multi_reduction <add>, %64, %cst_36 [1] : vector<10x32xf32> to vector<10xf32>
    %68 = vector.shape_cast %67 : vector<10xf32> to vector<10x1xf32>
    %cst_37 = arith.constant 3.200000e+01 : f32
    %69 = vector.broadcast %cst_37 : f32 to vector<10x1xf32>
    %70 = arith.divf %68, %69 : vector<10x1xf32>
    %71 = vector.broadcast %70 : vector<10x1xf32> to vector<10x32xf32>
    %72 = arith.subf %64, %71 : vector<10x32xf32>
    %73 = arith.mulf %72, %72 : vector<10x32xf32>
    %cst_38 = arith.constant dense<0.000000e+00> : vector<10xf32>
    %74 = vector.multi_reduction <add>, %73, %cst_38 [1] : vector<10x32xf32> to vector<10xf32>
    %75 = vector.shape_cast %74 : vector<10xf32> to vector<10x1xf32>
    %cst_39 = arith.constant 3.200000e+01 : f32
    %76 = vector.broadcast %cst_39 : f32 to vector<10x1xf32>
    %77 = arith.divf %75, %76 : vector<10x1xf32>
    %cst_40 = arith.constant 9.99999997E-7 : f32
    %78 = vector.broadcast %cst_40 : f32 to vector<10x1xf32>
    %79 = arith.addf %77, %78 : vector<10x1xf32>
    %80 = math.rsqrt %79 : vector<10x1xf32>
    %81 = vector.broadcast %80 : vector<10x1xf32> to vector<10x32xf32>
    %82 = arith.mulf %72, %81 : vector<10x32xf32>
    %83 = vector.broadcast %65 : vector<1x32xf32> to vector<10x32xf32>
    %84 = arith.mulf %82, %83 : vector<10x32xf32>
    %85 = vector.broadcast %66 : vector<1x32xf32> to vector<10x32xf32>
    %86 = arith.addf %84, %85 : vector<10x32xf32>
    %c0_41 = arith.constant 0 : index
    %c0_42 = arith.constant 0 : index
    %c0_43 = arith.constant 0 : index
    %87 = vector.load %arg7[%c0_41, %c0_42, %c0_43] : memref<2x32x128xf32, #tpu.memory_space<vmem>>, vector<1x32x128xf32>
    %88 = vector.shape_cast %87 : vector<1x32x128xf32> to vector<32x128xf32>
    %cst_44 = arith.constant dense<0.000000e+00> : vector<10x128xf32>
    %89 = tpu.matmul %86, %88, %cst_44 {dimension_numbers = #tpu.dot_dimension_numbers<[1], [0], [0], [1], [0, 0, 1, 1], [], []>} : vector<10x32xf32>, vector<32x128xf32>, vector<10x128xf32> -> vector<10x128xf32>
    %c0_45 = arith.constant 0 : index
    %c0_46 = arith.constant 0 : index
    %c0_47 = arith.constant 0 : index
    %90 = vector.load %arg8[%c0_45, %c0_46, %c0_47] : memref<2x1x128xf32, #tpu.memory_space<vmem>>, vector<1x1x128xf32>
    %91 = vector.shape_cast %90 : vector<1x1x128xf32> to vector<1x128xf32>
    %92 = vector.broadcast %91 : vector<1x128xf32> to vector<10x128xf32>
    %93 = arith.addf %89, %92 : vector<10x128xf32>
    %cst_48 = arith.constant 5.000000e-01 : f32
    %94 = vector.broadcast %cst_48 : f32 to vector<10x128xf32>
    %95 = arith.mulf %94, %93 : vector<10x128xf32>
    %cst_49 = arith.constant 4.471500e-02 : f32
    %96 = vector.broadcast %cst_49 : f32 to vector<10x128xf32>
    %97 = arith.mulf %96, %93 : vector<10x128xf32>
    %98 = arith.mulf %97, %93 : vector<10x128xf32>
    %99 = arith.mulf %98, %93 : vector<10x128xf32>
    %100 = arith.addf %93, %99 : vector<10x128xf32>
    %cst_50 = arith.constant 0.797884583 : f32
    %101 = vector.broadcast %cst_50 : f32 to vector<10x128xf32>
    %102 = arith.mulf %101, %100 : vector<10x128xf32>
    %103 = math.tanh %102 : vector<10x128xf32>
    %cst_51 = arith.constant 1.000000e+00 : f32
    %104 = vector.broadcast %cst_51 : f32 to vector<10x128xf32>
    %105 = arith.addf %104, %103 : vector<10x128xf32>
    %106 = arith.mulf %95, %105 : vector<10x128xf32>
    %c0_52 = arith.constant 0 : index
    %c0_53 = arith.constant 0 : index
    %c0_54 = arith.constant 0 : index
    %107 = vector.load %arg9[%c0_52, %c0_53, %c0_54] : memref<2x128x32xf32, #tpu.memory_space<vmem>>, vector<1x128x32xf32>
    %108 = vector.shape_cast %107 : vector<1x128x32xf32> to vector<128x32xf32>
    %cst_55 = arith.constant dense<0.000000e+00> : vector<10x32xf32>
    %109 = tpu.matmul %106, %108, %cst_55 {dimension_numbers = #tpu.dot_dimension_numbers<[1], [0], [0], [1], [0, 0, 1, 1], [], []>} : vector<10x128xf32>, vector<128x32xf32>, vector<10x32xf32> -> vector<10x32xf32>
    %110 = vector.extract_strided_slice %11 {offsets = [5, 0], sizes = [1, 32], strides = [1, 1]} : vector<6x32xf32> to vector<1x32xf32>
    %111 = vector.broadcast %110 : vector<1x32xf32> to vector<10x32xf32>
    %112 = arith.addf %109, %111 : vector<10x32xf32>
    %113 = arith.addf %64, %112 : vector<10x32xf32>
    %c1 = arith.constant 1 : index
    %c0_56 = arith.constant 0 : index
    %c0_57 = arith.constant 0 : index
    %114 = vector.load %arg10[%c1, %c0_56, %c0_57] : memref<2x6x32xf32, #tpu.memory_space<vmem>>, vector<1x6x32xf32>
    %115 = vector.shape_cast %114 : vector<1x6x32xf32> to vector<6x32xf32>
    %116 = vector.extract_strided_slice %115 {offsets = [0, 0], sizes = [1, 32], strides = [1, 1]} : vector<6x32xf32> to vector<1x32xf32>
    %117 = vector.extract_strided_slice %115 {offsets = [1, 0], sizes = [1, 32], strides = [1, 1]} : vector<6x32xf32> to vector<1x32xf32>
    %cst_58 = arith.constant dense<0.000000e+00> : vector<10xf32>
    %118 = vector.multi_reduction <add>, %113, %cst_58 [1] : vector<10x32xf32> to vector<10xf32>
    %119 = vector.shape_cast %118 : vector<10xf32> to vector<10x1xf32>
    %cst_59 = arith.constant 3.200000e+01 : f32
    %120 = vector.broadcast %cst_59 : f32 to vector<10x1xf32>
    %121 = arith.divf %119, %120 : vector<10x1xf32>
    %122 = vector.broadcast %121 : vector<10x1xf32> to vector<10x32xf32>
    %123 = arith.subf %113, %122 : vector<10x32xf32>
    %124 = arith.mulf %123, %123 : vector<10x32xf32>
    %cst_60 = arith.constant dense<0.000000e+00> : vector<10xf32>
    %125 = vector.multi_reduction <add>, %124, %cst_60 [1] : vector<10x32xf32> to vector<10xf32>
    %126 = vector.shape_cast %125 : vector<10xf32> to vector<10x1xf32>
    %cst_61 = arith.constant 3.200000e+01 : f32
    %127 = vector.broadcast %cst_61 : f32 to vector<10x1xf32>
    %128 = arith.divf %126, %127 : vector<10x1xf32>
    %cst_62 = arith.constant 9.99999997E-7 : f32
    %129 = vector.broadcast %cst_62 : f32 to vector<10x1xf32>
    %130 = arith.addf %128, %129 : vector<10x1xf32>
    %131 = math.rsqrt %130 : vector<10x1xf32>
    %132 = vector.broadcast %131 : vector<10x1xf32> to vector<10x32xf32>
    %133 = arith.mulf %123, %132 : vector<10x32xf32>
    %134 = vector.broadcast %116 : vector<1x32xf32> to vector<10x32xf32>
    %135 = arith.mulf %133, %134 : vector<10x32xf32>
    %136 = vector.broadcast %117 : vector<1x32xf32> to vector<10x32xf32>
    %137 = arith.addf %135, %136 : vector<10x32xf32>
    %c1_63 = arith.constant 1 : index
    %c0_64 = arith.constant 0 : index
    %c0_65 = arith.constant 0 : index
    %138 = vector.load %arg4[%c1_63, %c0_64, %c0_65] : memref<2x32x96xf32, #tpu.memory_space<vmem>>, vector<1x32x96xf32>
    %139 = vector.shape_cast %138 : vector<1x32x96xf32> to vector<32x96xf32>
    %cst_66 = arith.constant dense<0.000000e+00> : vector<10x96xf32>
    %140 = tpu.matmul %137, %139, %cst_66 {dimension_numbers = #tpu.dot_dimension_numbers<[1], [0], [0], [1], [0, 0, 1, 1], [], []>} : vector<10x32xf32>, vector<32x96xf32>, vector<10x96xf32> -> vector<10x96xf32>
    %c1_67 = arith.constant 1 : index
    %c0_68 = arith.constant 0 : index
    %c0_69 = arith.constant 0 : index
    %141 = vector.load %arg5[%c1_67, %c0_68, %c0_69] : memref<2x1x96xf32, #tpu.memory_space<vmem>>, vector<1x1x96xf32>
    %142 = vector.shape_cast %141 : vector<1x1x96xf32> to vector<1x96xf32>
    %143 = vector.broadcast %142 : vector<1x96xf32> to vector<10x96xf32>
    %144 = arith.addf %140, %143 : vector<10x96xf32>
    %145 = vector.extract_strided_slice %144 {offsets = [0, 0], sizes = [10, 32], strides = [1, 1]} : vector<10x96xf32> to vector<10x32xf32>
    %146 = vector.extract_strided_slice %144 {offsets = [0, 32], sizes = [10, 32], strides = [1, 1]} : vector<10x96xf32> to vector<10x32xf32>
    %147 = vector.extract_strided_slice %144 {offsets = [0, 64], sizes = [10, 32], strides = [1, 1]} : vector<10x96xf32> to vector<10x32xf32>
    %148 = tpu.concatenate %146, %146, %146, %146 in 0 : vector<10x32xf32>, vector<10x32xf32>, vector<10x32xf32>, vector<10x32xf32> -> vector<40x32xf32>
    %149 = arith.mulf %148, %0 : vector<40x32xf32>
    %150 = tpu.concatenate %147, %147, %147, %147 in 0 : vector<10x32xf32>, vector<10x32xf32>, vector<10x32xf32>, vector<10x32xf32> -> vector<40x32xf32>
    %151 = arith.mulf %150, %0 : vector<40x32xf32>
    %cst_70 = arith.constant dense<0.000000e+00> : vector<10x40xf32>
    %152 = tpu.matmul %145, %149, %cst_70 {dimension_numbers = #tpu.dot_dimension_numbers<[1], [1], [0], [0], [0, 0, 1, 0], [], []>} : vector<10x32xf32>, vector<40x32xf32>, vector<10x40xf32> -> vector<10x40xf32>
    %153 = arith.addf %152, %1 : vector<10x40xf32>
    %cst_71 = arith.constant dense<0xFF800000> : vector<10xf32>
    %154 = vector.multi_reduction <maximumf>, %153, %cst_71 [1] : vector<10x40xf32> to vector<10xf32>
    %155 = vector.shape_cast %154 : vector<10xf32> to vector<10x1xf32>
    %156 = vector.broadcast %155 : vector<10x1xf32> to vector<10x40xf32>
    %157 = arith.subf %153, %156 : vector<10x40xf32>
    %158 = math.exp %157 : vector<10x40xf32>
    %cst_72 = arith.constant dense<0.000000e+00> : vector<10x40xf32>
    %159 = tpu.matmul %158, %2, %cst_72 {dimension_numbers = #tpu.dot_dimension_numbers<[1], [0], [0], [1], [0, 0, 1, 1], [], []>} : vector<10x40xf32>, vector<40x40xf32>, vector<10x40xf32> -> vector<10x40xf32>
    %160 = arith.divf %158, %159 : vector<10x40xf32>
    %cst_73 = arith.constant dense<0.000000e+00> : vector<10x32xf32>
    %161 = tpu.matmul %160, %151, %cst_73 {dimension_numbers = #tpu.dot_dimension_numbers<[1], [0], [0], [1], [0, 0, 1, 1], [], []>} : vector<10x40xf32>, vector<40x32xf32>, vector<10x32xf32> -> vector<10x32xf32>
    %c1_74 = arith.constant 1 : index
    %c0_75 = arith.constant 0 : index
    %c0_76 = arith.constant 0 : index
    %162 = vector.load %arg6[%c1_74, %c0_75, %c0_76] : memref<2x32x32xf32, #tpu.memory_space<vmem>>, vector<1x32x32xf32>
    %163 = vector.shape_cast %162 : vector<1x32x32xf32> to vector<32x32xf32>
    %cst_77 = arith.constant dense<0.000000e+00> : vector<10x32xf32>
    %164 = tpu.matmul %161, %163, %cst_77 {dimension_numbers = #tpu.dot_dimension_numbers<[1], [0], [0], [1], [0, 0, 1, 1], [], []>} : vector<10x32xf32>, vector<32x32xf32>, vector<10x32xf32> -> vector<10x32xf32>
    %165 = vector.extract_strided_slice %115 {offsets = [4, 0], sizes = [1, 32], strides = [1, 1]} : vector<6x32xf32> to vector<1x32xf32>
    %166 = vector.broadcast %165 : vector<1x32xf32> to vector<10x32xf32>
    %167 = arith.addf %164, %166 : vector<10x32xf32>
    %168 = arith.addf %113, %167 : vector<10x32xf32>
    %169 = vector.extract_strided_slice %115 {offsets = [2, 0], sizes = [1, 32], strides = [1, 1]} : vector<6x32xf32> to vector<1x32xf32>
    %170 = vector.extract_strided_slice %115 {offsets = [3, 0], sizes = [1, 32], strides = [1, 1]} : vector<6x32xf32> to vector<1x32xf32>
    %cst_78 = arith.constant dense<0.000000e+00> : vector<10xf32>
    %171 = vector.multi_reduction <add>, %168, %cst_78 [1] : vector<10x32xf32> to vector<10xf32>
    %172 = vector.shape_cast %171 : vector<10xf32> to vector<10x1xf32>
    %cst_79 = arith.constant 3.200000e+01 : f32
    %173 = vector.broadcast %cst_79 : f32 to vector<10x1xf32>
    %174 = arith.divf %172, %173 : vector<10x1xf32>
    %175 = vector.broadcast %174 : vector<10x1xf32> to vector<10x32xf32>
    %176 = arith.subf %168, %175 : vector<10x32xf32>
    %177 = arith.mulf %176, %176 : vector<10x32xf32>
    %cst_80 = arith.constant dense<0.000000e+00> : vector<10xf32>
    %178 = vector.multi_reduction <add>, %177, %cst_80 [1] : vector<10x32xf32> to vector<10xf32>
    %179 = vector.shape_cast %178 : vector<10xf32> to vector<10x1xf32>
    %cst_81 = arith.constant 3.200000e+01 : f32
    %180 = vector.broadcast %cst_81 : f32 to vector<10x1xf32>
    %181 = arith.divf %179, %180 : vector<10x1xf32>
    %cst_82 = arith.constant 9.99999997E-7 : f32
    %182 = vector.broadcast %cst_82 : f32 to vector<10x1xf32>
    %183 = arith.addf %181, %182 : vector<10x1xf32>
    %184 = math.rsqrt %183 : vector<10x1xf32>
    %185 = vector.broadcast %184 : vector<10x1xf32> to vector<10x32xf32>
    %186 = arith.mulf %176, %185 : vector<10x32xf32>
    %187 = vector.broadcast %169 : vector<1x32xf32> to vector<10x32xf32>
    %188 = arith.mulf %186, %187 : vector<10x32xf32>
    %189 = vector.broadcast %170 : vector<1x32xf32> to vector<10x32xf32>
    %190 = arith.addf %188, %189 : vector<10x32xf32>
    %c1_83 = arith.constant 1 : index
    %c0_84 = arith.constant 0 : index
    %c0_85 = arith.constant 0 : index
    %191 = vector.load %arg7[%c1_83, %c0_84, %c0_85] : memref<2x32x128xf32, #tpu.memory_space<vmem>>, vector<1x32x128xf32>
    %192 = vector.shape_cast %191 : vector<1x32x128xf32> to vector<32x128xf32>
    %cst_86 = arith.constant dense<0.000000e+00> : vector<10x128xf32>
    %193 = tpu.matmul %190, %192, %cst_86 {dimension_numbers = #tpu.dot_dimension_numbers<[1], [0], [0], [1], [0, 0, 1, 1], [], []>} : vector<10x32xf32>, vector<32x128xf32>, vector<10x128xf32> -> vector<10x128xf32>
    %c1_87 = arith.constant 1 : index
    %c0_88 = arith.constant 0 : index
    %c0_89 = arith.constant 0 : index
    %194 = vector.load %arg8[%c1_87, %c0_88, %c0_89] : memref<2x1x128xf32, #tpu.memory_space<vmem>>, vector<1x1x128xf32>
    %195 = vector.shape_cast %194 : vector<1x1x128xf32> to vector<1x128xf32>
    %196 = vector.broadcast %195 : vector<1x128xf32> to vector<10x128xf32>
    %197 = arith.addf %193, %196 : vector<10x128xf32>
    %cst_90 = arith.constant 5.000000e-01 : f32
    %198 = vector.broadcast %cst_90 : f32 to vector<10x128xf32>
    %199 = arith.mulf %198, %197 : vector<10x128xf32>
    %cst_91 = arith.constant 4.471500e-02 : f32
    %200 = vector.broadcast %cst_91 : f32 to vector<10x128xf32>
    %201 = arith.mulf %200, %197 : vector<10x128xf32>
    %202 = arith.mulf %201, %197 : vector<10x128xf32>
    %203 = arith.mulf %202, %197 : vector<10x128xf32>
    %204 = arith.addf %197, %203 : vector<10x128xf32>
    %cst_92 = arith.constant 0.797884583 : f32
    %205 = vector.broadcast %cst_92 : f32 to vector<10x128xf32>
    %206 = arith.mulf %205, %204 : vector<10x128xf32>
    %207 = math.tanh %206 : vector<10x128xf32>
    %cst_93 = arith.constant 1.000000e+00 : f32
    %208 = vector.broadcast %cst_93 : f32 to vector<10x128xf32>
    %209 = arith.addf %208, %207 : vector<10x128xf32>
    %210 = arith.mulf %199, %209 : vector<10x128xf32>
    %c1_94 = arith.constant 1 : index
    %c0_95 = arith.constant 0 : index
    %c0_96 = arith.constant 0 : index
    %211 = vector.load %arg9[%c1_94, %c0_95, %c0_96] : memref<2x128x32xf32, #tpu.memory_space<vmem>>, vector<1x128x32xf32>
    %212 = vector.shape_cast %211 : vector<1x128x32xf32> to vector<128x32xf32>
    %cst_97 = arith.constant dense<0.000000e+00> : vector<10x32xf32>
    %213 = tpu.matmul %210, %212, %cst_97 {dimension_numbers = #tpu.dot_dimension_numbers<[1], [0], [0], [1], [0, 0, 1, 1], [], []>} : vector<10x128xf32>, vector<128x32xf32>, vector<10x32xf32> -> vector<10x32xf32>
    %214 = vector.extract_strided_slice %115 {offsets = [5, 0], sizes = [1, 32], strides = [1, 1]} : vector<6x32xf32> to vector<1x32xf32>
    %215 = vector.broadcast %214 : vector<1x32xf32> to vector<10x32xf32>
    %216 = arith.addf %213, %215 : vector<10x32xf32>
    %217 = arith.addf %168, %216 : vector<10x32xf32>
    %c0_98 = arith.constant 0 : index
    %c0_99 = arith.constant 0 : index
    %218 = vector.load %arg11[%c0_98, %c0_99] : memref<2x32xf32, #tpu.memory_space<vmem>>, vector<2x32xf32>
    %219 = vector.extract_strided_slice %217 {offsets = [0, 0], sizes = [1, 32], strides = [1, 1]} : vector<10x32xf32> to vector<1x32xf32>
    %220 = vector.extract_strided_slice %217 {offsets = [5, 0], sizes = [1, 32], strides = [1, 1]} : vector<10x32xf32> to vector<1x32xf32>
    %221 = tpu.concatenate %219, %220 in 0 : vector<1x32xf32>, vector<1x32xf32> -> vector<2x32xf32>
    %222 = vector.extract_strided_slice %218 {offsets = [0, 0], sizes = [1, 32], strides = [1, 1]} : vector<2x32xf32> to vector<1x32xf32>
    %223 = vector.extract_strided_slice %218 {offsets = [1, 0], sizes = [1, 32], strides = [1, 1]} : vector<2x32xf32> to vector<1x32xf32>
    %cst_100 = arith.constant dense<0.000000e+00> : vector<2xf32>
    %224 = vector.multi_reduction <add>, %221, %cst_100 [1] : vector<2x32xf32> to vector<2xf32>
    %225 = vector.shape_cast %224 : vector<2xf32> to vector<2x1xf32>
    %cst_101 = arith.constant 3.200000e+01 : f32
    %226 = vector.broadcast %cst_101 : f32 to vector<2x1xf32>
    %227 = arith.divf %225, %226 : vector<2x1xf32>
    %228 = vector.broadcast %227 : vector<2x1xf32> to vector<2x32xf32>
    %229 = arith.subf %221, %228 : vector<2x32xf32>
    %230 = arith.mulf %229, %229 : vector<2x32xf32>
    %cst_102 = arith.constant dense<0.000000e+00> : vector<2xf32>
    %231 = vector.multi_reduction <add>, %230, %cst_102 [1] : vector<2x32xf32> to vector<2xf32>
    %232 = vector.shape_cast %231 : vector<2xf32> to vector<2x1xf32>
    %cst_103 = arith.constant 3.200000e+01 : f32
    %233 = vector.broadcast %cst_103 : f32 to vector<2x1xf32>
    %234 = arith.divf %232, %233 : vector<2x1xf32>
    %cst_104 = arith.constant 9.99999997E-7 : f32
    %235 = vector.broadcast %cst_104 : f32 to vector<2x1xf32>
    %236 = arith.addf %234, %235 : vector<2x1xf32>
    %237 = math.rsqrt %236 : vector<2x1xf32>
    %238 = vector.broadcast %237 : vector<2x1xf32> to vector<2x32xf32>
    %239 = arith.mulf %229, %238 : vector<2x32xf32>
    %240 = vector.broadcast %222 : vector<1x32xf32> to vector<2x32xf32>
    %241 = arith.mulf %239, %240 : vector<2x32xf32>
    %242 = vector.broadcast %223 : vector<1x32xf32> to vector<2x32xf32>
    %243 = arith.addf %241, %242 : vector<2x32xf32>
    %c0_105 = arith.constant 0 : index
    %c0_106 = arith.constant 0 : index
    %244 = vector.load %arg12[%c0_105, %c0_106] : memref<32x128xf32, #tpu.memory_space<vmem>>, vector<32x128xf32>
    %cst_107 = arith.constant dense<0.000000e+00> : vector<2x128xf32>
    %245 = tpu.matmul %243, %244, %cst_107 {dimension_numbers = #tpu.dot_dimension_numbers<[1], [0], [0], [1], [0, 0, 1, 1], [], []>} : vector<2x32xf32>, vector<32x128xf32>, vector<2x128xf32> -> vector<2x128xf32>
    %c0_108 = arith.constant 0 : index
    %c0_109 = arith.constant 0 : index
    %246 = vector.load %arg13[%c0_108, %c0_109] : memref<1x128xf32, #tpu.memory_space<vmem>>, vector<1x128xf32>
    %247 = vector.broadcast %246 : vector<1x128xf32> to vector<2x128xf32>
    %248 = arith.addf %245, %247 : vector<2x128xf32>
    %c0_110 = arith.constant 0 : index
    %c0_111 = arith.constant 0 : index
    %c0_112 = arith.constant 0 : index
    %249 = vector.load %arg17[%c0_110, %c0_111, %c0_112] : memref<1x2x128xf32, #tpu.memory_space<vmem>>, vector<1x2x128xf32>
    %250 = vector.shape_cast %249 : vector<1x2x128xf32> to vector<2x128xf32>
    %251 = vector.shape_cast %248 : vector<2x128xf32> to vector<1x2x128xf32>
    tpu.vector_store %arg17[%c0_110, %c0_111, %c0_112], %251 {strides = array<i32>} : memref<1x2x128xf32, #tpu.memory_space<vmem>>, vector<1x2x128xf32>,
    return
  }
  func.func @transform_0(%arg0: i32) -> (i32, i32, i32) {
    %c0_i32 = arith.constant 0 : i32
    %c0_i32_0 = arith.constant 0 : i32
    %c0_i32_1 = arith.constant 0 : i32
    return %arg0, %c0_i32, %c0_i32_0 : i32, i32, i32
  }
  func.func @transform_1(%arg0: i32) -> (i32, i32, i32) {
    %c0_i32 = arith.constant 0 : i32
    %c0_i32_0 = arith.constant 0 : i32
    %c0_i32_1 = arith.constant 0 : i32
    return %arg0, %c0_i32, %c0_i32_0 : i32, i32, i32
  }
  func.func @transform_2(%arg0: i32) -> (i32, i32) {
    %c0_i32 = arith.constant 0 : i32
    %c0_i32_0 = arith.constant 0 : i32
    %c0_i32_1 = arith.constant 0 : i32
    return %c0_i32, %c0_i32_0 : i32, i32
  }
  func.func @transform_3(%arg0: i32) -> (i32, i32, i32) {
    %c0_i32 = arith.constant 0 : i32
    %c0_i32_0 = arith.constant 0 : i32
    %c0_i32_1 = arith.constant 0 : i32
    %c0_i32_2 = arith.constant 0 : i32
    return %c0_i32, %c0_i32_0, %c0_i32_1 : i32, i32, i32
  }
  func.func @transform_4(%arg0: i32) -> (i32, i32, i32) {
    %c0_i32 = arith.constant 0 : i32
    %c0_i32_0 = arith.constant 0 : i32
    %c0_i32_1 = arith.constant 0 : i32
    %c0_i32_2 = arith.constant 0 : i32
    return %c0_i32, %c0_i32_0, %c0_i32_1 : i32, i32, i32
  }
  func.func @transform_5(%arg0: i32) -> (i32, i32, i32) {
    %c0_i32 = arith.constant 0 : i32
    %c0_i32_0 = arith.constant 0 : i32
    %c0_i32_1 = arith.constant 0 : i32
    %c0_i32_2 = arith.constant 0 : i32
    return %c0_i32, %c0_i32_0, %c0_i32_1 : i32, i32, i32
  }
  func.func @transform_6(%arg0: i32) -> (i32, i32, i32) {
    %c0_i32 = arith.constant 0 : i32
    %c0_i32_0 = arith.constant 0 : i32
    %c0_i32_1 = arith.constant 0 : i32
    %c0_i32_2 = arith.constant 0 : i32
    return %c0_i32, %c0_i32_0, %c0_i32_1 : i32, i32, i32
  }
  func.func @transform_7(%arg0: i32) -> (i32, i32, i32) {
    %c0_i32 = arith.constant 0 : i32
    %c0_i32_0 = arith.constant 0 : i32
    %c0_i32_1 = arith.constant 0 : i32
    %c0_i32_2 = arith.constant 0 : i32
    return %c0_i32, %c0_i32_0, %c0_i32_1 : i32, i32, i32
  }
  func.func @transform_8(%arg0: i32) -> (i32, i32, i32) {
    %c0_i32 = arith.constant 0 : i32
    %c0_i32_0 = arith.constant 0 : i32
    %c0_i32_1 = arith.constant 0 : i32
    %c0_i32_2 = arith.constant 0 : i32
    return %c0_i32, %c0_i32_0, %c0_i32_1 : i32, i32, i32
  }
  func.func @transform_9(%arg0: i32) -> (i32, i32, i32) {
    %c0_i32 = arith.constant 0 : i32
    %c0_i32_0 = arith.constant 0 : i32
    %c0_i32_1 = arith.constant 0 : i32
    %c0_i32_2 = arith.constant 0 : i32
    return %c0_i32, %c0_i32_0, %c0_i32_1 : i32, i32, i32
  }
  func.func @transform_10(%arg0: i32) -> (i32, i32) {
    %c0_i32 = arith.constant 0 : i32
    %c0_i32_0 = arith.constant 0 : i32
    %c0_i32_1 = arith.constant 0 : i32
    return %c0_i32, %c0_i32_0 : i32, i32
  }
  func.func @transform_11(%arg0: i32) -> (i32, i32) {
    %c0_i32 = arith.constant 0 : i32
    %c0_i32_0 = arith.constant 0 : i32
    %c0_i32_1 = arith.constant 0 : i32
    return %c0_i32, %c0_i32_0 : i32, i32
  }
  func.func @transform_12(%arg0: i32) -> (i32, i32) {
    %c0_i32 = arith.constant 0 : i32
    %c0_i32_0 = arith.constant 0 : i32
    %c0_i32_1 = arith.constant 0 : i32
    return %c0_i32, %c0_i32_0 : i32, i32
  }
  func.func @transform_13(%arg0: i32) -> (i32, i32) {
    %c0_i32 = arith.constant 0 : i32
    %c0_i32_0 = arith.constant 0 : i32
    %c0_i32_1 = arith.constant 0 : i32
    return %c0_i32, %c0_i32_0 : i32, i32
  }
  func.func @transform_14(%arg0: i32) -> (i32, i32) {
    %c0_i32 = arith.constant 0 : i32
    %c0_i32_0 = arith.constant 0 : i32
    %c0_i32_1 = arith.constant 0 : i32
    return %c0_i32, %c0_i32_0 : i32, i32
  }
  func.func @transform_15(%arg0: i32) -> (i32, i32) {
    %c0_i32 = arith.constant 0 : i32
    %c0_i32_0 = arith.constant 0 : i32
    %c0_i32_1 = arith.constant 0 : i32
    return %c0_i32, %c0_i32_0 : i32, i32
  }
  func.func @transform_16(%arg0: i32) -> (i32, i32, i32) {
    %c0_i32 = arith.constant 0 : i32
    %c0_i32_0 = arith.constant 0 : i32
    %c0_i32_1 = arith.constant 0 : i32
    return %arg0, %c0_i32, %c0_i32_0 : i32, i32, i32
  }
}

</mosaic_0001>

<llo_original>
// kernel: vit_forward.1
$region0: #{vit_forward.1}
  #allocation0 [shape = 'u32[]', space=smem, size = 0x4, offset = 0x4, fixed_abs, tag = 'smem constant byte address 0x4 - core index']
  #allocation1 [shape = 'u32[72,128]{1,0:T(1,128)}', space=vmem, size = 0x9000, scoped, tag = 'internal scratch']
  %s0 = inlined_call_operand.vmem [shape: f32[1,10,192], index: 0, kind: input, shape index: {}]
  %s1 = inlined_call_operand.vmem [shape: f32[1,10,32], index: 1, kind: input, shape index: {}]
  %s2 = inlined_call_operand.vmem [shape: f32[192,32], index: 2, kind: input, shape index: {}]
  %s3 = inlined_call_operand.vmem [shape: f32[2,32,96], index: 3, kind: input, shape index: {}]
  %s4 = inlined_call_operand.vmem [shape: f32[2,1,96], index: 4, kind: input, shape index: {}]
  %s5 = inlined_call_operand.vmem [shape: f32[2,32,32], index: 5, kind: input, shape index: {}]
  %s6 = inlined_call_operand.vmem [shape: f32[2,32,128], index: 6, kind: input, shape index: {}]
  %s7 = inlined_call_operand.vmem [shape: f32[2,1,128], index: 7, kind: input, shape index: {}]
  %s8 = inlined_call_operand.vmem [shape: f32[2,128,32], index: 8, kind: input, shape index: {}]
  %s9 = inlined_call_operand.vmem [shape: f32[2,6,32], index: 9, kind: input, shape index: {}]
  %s10 = inlined_call_operand.vmem [shape: f32[2,32], index: 10, kind: input, shape index: {}]
  %s11 = inlined_call_operand.vmem [shape: f32[32,128], index: 11, kind: input, shape index: {}]
  %s12 = inlined_call_operand.vmem [shape: f32[1,128], index: 12, kind: input, shape index: {}]
  %s13 = inlined_call_operand.vmem [shape: f32[40,32], index: 13, kind: input, shape index: {}]
  %s14 = inlined_call_operand.vmem [shape: f32[10,40], index: 14, kind: input, shape index: {}]
  %s15 = inlined_call_operand.vmem [shape: f32[40,40], index: 15, kind: input, shape index: {}]
  %s16 = inlined_call_operand.hbm [shape: f32[1,2,128], index: 16, kind: output, shape index: {}]
  %s17 = sld [smem:[#allocation0]]
  $region74: #{vit_forward.1} parent=0
    _
  %s19 = ssub.s32 1, %s17
  %s20 = scalar_select 0, %s19, %s17
  $region1: #{vit_forward.1} parent=0
    #allocation2 [shape = 'u8[1024]{0}', space=vmem, size = 0x400, scoped, tag = 'output window, operand 0, single buffered']
    #allocation3 [shape = 's32[1]{0}', space=sflag, size = 0x4, scoped, tag = 'scoped memory for vit_forward.1']
    %21 = vsyncpa [#allocation3], 0
    // Predicated region
    $region2: #{vit_forward.1} parent=1 // pred_check
      _
    $region3: #{vit_forward.1} parent=1 // pred_check_branch
      %23 = sbr.rel (0) target = $region5
    $region4: #{vit_forward.1} parent=1 // pred_region
      _
    $region5: #{vit_forward.1} parent=1 // pred_fallthru
      _
    // Predicated region
    $region6: #{vit_forward.1} parent=1 // pred_check
      _
    $region7: #{vit_forward.1} parent=1 // pred_check_branch
      %25 = sbr.rel (0) target = $region9
    $region8: #{vit_forward.1} parent=1 // pred_region
      _
    $region9: #{vit_forward.1} parent=1 // pred_fallthru
      _
    // Predicated region
    $region10: #{vit_forward.1} parent=1 // pred_check
      _
    $region11: #{vit_forward.1} parent=1 // pred_check_branch
      %27 = sbr.rel (0) target = $region13
    $region12: #{vit_forward.1} parent=1 // pred_region
      _
    $region13: #{vit_forward.1} parent=1 // pred_fallthru
      _
    // Predicated region
    $region14: #{vit_forward.1} parent=1 // pred_check
      _
    $region15: #{vit_forward.1} parent=1 // pred_check_branch
      %29 = sbr.rel (0) target = $region17
    $region16: #{vit_forward.1} parent=1 // pred_region
      _
    $region17: #{vit_forward.1} parent=1 // pred_fallthru
      _
    // Predicated region
    $region18: #{vit_forward.1} parent=1 // pred_check
      _
    $region19: #{vit_forward.1} parent=1 // pred_check_branch
      %31 = sbr.rel (0) target = $region21
    $region20: #{vit_forward.1} parent=1 // pred_region
      _
    $region21: #{vit_forward.1} parent=1 // pred_fallthru
      _
    // Predicated region
    $region22: #{vit_forward.1} parent=1 // pred_check
      _
    $region23: #{vit_forward.1} parent=1 // pred_check_branch
      %33 = sbr.rel (0) target = $region25
    $region24: #{vit_forward.1} parent=1 // pred_region
      _
    $region25: #{vit_forward.1} parent=1 // pred_fallthru
      _
    // Predicated region
    $region26: #{vit_forward.1} parent=1 // pred_check
      _
    $region27: #{vit_forward.1} parent=1 // pred_check_branch
      %35 = sbr.rel (0) target = $region29
    $region28: #{vit_forward.1} parent=1 // pred_region
      _
    $region29: #{vit_forward.1} parent=1 // pred_fallthru
      _
    // Predicated region
    $region30: #{vit_forward.1} parent=1 // pred_check
      _
    $region31: #{vit_forward.1} parent=1 // pred_check_branch
      %37 = sbr.rel (0) target = $region33
    $region32: #{vit_forward.1} parent=1 // pred_region
      _
    $region33: #{vit_forward.1} parent=1 // pred_fallthru
      _
    // Predicated region
    $region34: #{vit_forward.1} parent=1 // pred_check
      _
    $region35: #{vit_forward.1} parent=1 // pred_check_branch
      %39 = sbr.rel (0) target = $region37
    $region36: #{vit_forward.1} parent=1 // pred_region
      _
    $region37: #{vit_forward.1} parent=1 // pred_fallthru
      _
    // Predicated region
    $region38: #{vit_forward.1} parent=1 // pred_check
      _
    $region39: #{vit_forward.1} parent=1 // pred_check_branch
      %41 = sbr.rel (0) target = $region41
    $region40: #{vit_forward.1} parent=1 // pred_region
      _
    $region41: #{vit_forward.1} parent=1 // pred_fallthru
      _
    // Predicated region
    $region42: #{vit_forward.1} parent=1 // pred_check
      _
    $region43: #{vit_forward.1} parent=1 // pred_check_branch
      %43 = sbr.rel (0) target = $region45
    $region44: #{vit_forward.1} parent=1 // pred_region
      _
    $region45: #{vit_forward.1} parent=1 // pred_fallthru
      _
    // Predicated region
    $region46: #{vit_forward.1} parent=1 // pred_check
      _
    $region47: #{vit_forward.1} parent=1 // pred_check_branch
      %45 = sbr.rel (0) target = $region49
    $region48: #{vit_forward.1} parent=1 // pred_region
      _
    $region49: #{vit_forward.1} parent=1 // pred_fallthru
      _
    // Predicated region
    $region50: #{vit_forward.1} parent=1 // pred_check
      _
    $region51: #{vit_forward.1} parent=1 // pred_check_branch
      %47 = sbr.rel (0) target = $region53
    $region52: #{vit_forward.1} parent=1 // pred_region
      _
    $region53: #{vit_forward.1} parent=1 // pred_fallthru
      _
    // Predicated region
    $region54: #{vit_forward.1} parent=1 // pred_check
      _
    $region55: #{vit_forward.1} parent=1 // pred_check_branch
      %49 = sbr.rel (0) target = $region57
    $region56: #{vit_forward.1} parent=1 // pred_region
      _
    $region57: #{vit_forward.1} parent=1 // pred_fallthru
      _
    // Predicated region
    $region58: #{vit_forward.1} parent=1 // pred_check
      _
    $region59: #{vit_forward.1} parent=1 // pred_check_branch
      %51 = sbr.rel (0) target = $region61
    $region60: #{vit_forward.1} parent=1 // pred_region
      _
    $region61: #{vit_forward.1} parent=1 // pred_fallthru
      _
    // Predicated region
    $region62: #{vit_forward.1} parent=1 // pred_check
      _
    $region63: #{vit_forward.1} parent=1 // pred_check_branch
      %53 = sbr.rel (0) target = $region65
    $region64: #{vit_forward.1} parent=1 // pred_region
      _
    $region65: #{vit_forward.1} parent=1 // pred_fallthru
      _
    %v54 = vld [vmem:[%s13] sm:$0xff]
    %v55 = vld [vmem:[%s13 + $0x8] sm:$0xff]
    %v56 = vld [vmem:[%s13 + $0x10] sm:$0xff]
    %v57 = vld [vmem:[%s13 + $0x18] sm:$0xff]
    %v58 = vld [vmem:[%s13 + $0x20] sm:$0xff]
    %v59 = vld [vmem:[%s14] sm:$0xff]
    %v60 = vld [vmem:[%s14 + $0x8] sm:$0x3]
    %v61 = vld [vmem:[%s15] sm:$0xff]
    %v62 = vld [vmem:[%s15 + $0x8] sm:$0xff]
    %v63 = vld [vmem:[%s15 + $0x10] sm:$0xff]
    %v64 = vld [vmem:[%s15 + $0x18] sm:$0xff]
    %v65 = vld [vmem:[%s15 + $0x20] sm:$0xff]
    %v66 = vld [vmem:[%s0] sm:$0xff]
    %v67 = vld [vmem:[%s0 + $0x8] sm:$0xff]
    %v68 = vld [vmem:[%s0 + $0x10] sm:$0x3]
    %v69 = vld [vmem:[%s0 + $0x18] sm:$0x3]
    %v70 = vld [vmem:[%s2] sm:$0xff]
    %v71 = vld [vmem:[%s2 + $0x8] sm:$0xff]
    %v72 = vld [vmem:[%s2 + $0x10] sm:$0xff]
    %v73 = vld [vmem:[%s2 + $0x18] sm:$0xff]
    %v74 = vld [vmem:[%s2 + $0x20] sm:$0xff]
    %v75 = vld [vmem:[%s2 + $0x28] sm:$0xff]
    %v76 = vld [vmem:[%s2 + $0x30] sm:$0xff]
    %v77 = vld [vmem:[%s2 + $0x38] sm:$0xff]
    %v78 = vld [vmem:[%s2 + $0x40] sm:$0xff]
    %v79 = vld [vmem:[%s2 + $0x48] sm:$0xff]
    %v80 = vld [vmem:[%s2 + $0x50] sm:$0xff]
    %v81 = vld [vmem:[%s2 + $0x58] sm:$0xff]
    %v82 = vld [vmem:[%s2 + $0x60] sm:$0xff]
    %v83 = vld [vmem:[%s2 + $0x68] sm:$0xff]
    %v84 = vld [vmem:[%s2 + $0x70] sm:$0xff]
    %v85 = vld [vmem:[%s2 + $0x78] sm:$0xff]
    %v86 = vld [vmem:[%s2 + $0x80] sm:$0xff]
    %v87 = vld [vmem:[%s2 + $0x88] sm:$0xff]
    %v88 = vld [vmem:[%s2 + $0x90] sm:$0xff]
    %v89 = vld [vmem:[%s2 + $0x98] sm:$0xff]
    %v90 = vld [vmem:[%s2 + $0xa0] sm:$0xff]
    %v91 = vld [vmem:[%s2 + $0xa8] sm:$0xff]
    %v92 = vld [vmem:[%s2 + $0xb0] sm:$0xff]
    %v93 = vld [vmem:[%s2 + $0xb8] sm:$0xff]
    %v94 = vld [vmem:[%s1] sm:$0xff]
    %v95 = vld [vmem:[%s1 + $0x8] sm:$0x3]
    %vm96 = vcmask 523264
    %v98 = vsel %vm96, %v67, 0
    %v101 = vsel %vm96, %v69, 0
    %103 = vmatpush.msra.mxu0 %v85
    %104 = vmatpush.msra.mxu0 %v84
    %105 = vmatpush.msra.mxu0 %v83
    %106 = vmatpush.msra.mxu0 %v82
    %107 = vmatpush.msra.mxu0 %v81
    %108 = vmatpush.msra.mxu0 %v80
    %109 = vmatpush.msra.mxu0 %v79
    %110 = vmatpush.msra.mxu0 %v78
    %111 = vmatpush.msra.mxu0 %v77
    %112 = vmatpush.msra.mxu0 %v76
    %113 = vmatpush.msra.mxu0 %v75
    %114 = vmatpush.msra.mxu0 %v74
    %115 = vmatpush.msra.mxu0 %v73
    %116 = vmatpush.msra.mxu0 %v72
    %117 = vmatpush.msra.mxu0 %v71
    %118 = vmatpush.msra.mxu0 %v70
    %119 = vmatmul.f32.gmra.mxu0 %v66
    %v120 = vpop.f32.mrf.mxu0
    %v121 = vadd.f32 %v94, %v120
    %122 = vmatmul.f32.gmra.mxu0 %v68
    %v123 = vpop.f32.mrf.mxu0
    %v124 = vadd.f32 %v95, %v123
    %125 = vdwg.mxu0
    %126 = vmatpush.msra.mxu0 0.0
    %127 = vmatpush.msra.mxu0 0.0
    %128 = vmatpush.msra.mxu0 0.0
    %129 = vmatpush.msra.mxu0 0.0
    %130 = vmatpush.msra.mxu0 0.0
    %131 = vmatpush.msra.mxu0 0.0
    %132 = vmatpush.msra.mxu0 0.0
    %133 = vmatpush.msra.mxu0 0.0
    %134 = vmatpush.msra.mxu0 %v93
    %135 = vmatpush.msra.mxu0 %v92
    %136 = vmatpush.msra.mxu0 %v91
    %137 = vmatpush.msra.mxu0 %v90
    %138 = vmatpush.msra.mxu0 %v89
    %139 = vmatpush.msra.mxu0 %v88
    %140 = vmatpush.msra.mxu0 %v87
    %141 = vmatpush.msra.mxu0 %v86
    %142 = vmatmul.f32.gmra.mxu0 %v98
    %v143 = vpop.f32.mrf.mxu0
    %v144 = vadd.f32 %v121, %v143
    %145 = vmatmul.f32.gmra.mxu0 %v101
    %v146 = vpop.f32.mrf.mxu0
    %v147 = vadd.f32 %v124, %v146
    %148 = vdwg.mxu0
    %v149 = vld [vmem:[%s9] sm:$0x3f]
    %vm150 = vcmask 261120
    %v151 = vsel %vm150, %v144, 0.0
    %152 = vadd.xlane.f32.xlu0 %v151
    %v153 = vpop.xlane.xlu0 %152
    %vm154 = vcmask 254976
    %v155 = vsel %vm154, %v147, 0.0
    %156 = vadd.xlane.f32.xlu0 %v155
    %v157 = vpop.xlane.xlu0 %156
    %v158 = vrcp.pop 32.0
    %v159 = vmul.f32 32.0, %v158
    %v160 = vsub.f32 1.0, %v159
    %v161 = vmul.f32 %v158, %v160
    %v162 = vadd.f32 %v158, %v161
    %vm163 = vweird.f32 %v158
    %v164 = vsel %vm163, %v158, %v162
    %v165 = vmul.f32 %v153, %v164
    %v166 = vmul.f32 %v157, %v164
    %v167 = vsub.f32 %v144, %v165
    %v168 = vsub.f32 %v147, %v166
    %v169 = vmul.f32 %v167, %v167
    %v170 = vmul.f32 %v168, %v168
    %v171 = vsel %vm150, %v169, 0.0
    %172 = vadd.xlane.f32.xlu0 %v171
    %v173 = vpop.xlane.xlu0 %172
    %v174 = vsel %vm154, %v170, 0.0
    %175 = vadd.xlane.f32.xlu0 %v174
    %v176 = vpop.xlane.xlu0 %175
    %v177 = vmul.f32 %v173, %v164
    %v178 = vmul.f32 %v176, %v164
    %v179 = vadd.f32 %v177, 1e-06
    %v180 = vadd.f32 %v178, 1e-06
    %v181 = vrsqrt.pop %v179
    %v182 = vmul.f32 %v181, %v179
    %v183 = vmul.f32 %v182, %v181
    %v184 = vmul.f32 0.5, %v183
    %v185 = vsub.f32 1.5, %v184
    %v186 = vmul.f32 %v181, %v185
    %vm187 = vweird.f32 %v179
    %vm188 = vweird.f32 %v181
    %vm189 = vmor %vm187, %vm188
    %v190 = vsel %vm189, %v181, %v186
    %v191 = vrsqrt.pop %v180
    %v192 = vmul.f32 %v191, %v180
    %v193 = vmul.f32 %v192, %v191
    %v194 = vmul.f32 0.5, %v193
    %v195 = vsub.f32 1.5, %v194
    %v196 = vmul.f32 %v191, %v195
    %vm197 = vweird.f32 %v180
    %vm198 = vweird.f32 %v191
    %vm199 = vmor %vm197, %vm198
    %v200 = vsel %vm199, %v191, %v196
    %v201 = vmul.f32 %v167, %v190
    %v202 = vmul.f32 %v168, %v200
    %v203 = vperm.slane %v149, 0
    %v204 = vmul.f32 %v201, %v203
    %v205 = vmul.f32 %v202, %v203
    %v206 = vperm.slane %v149, 1
    %v207 = vadd.f32 %v204, %v206
    %v208 = vadd.f32 %v205, %v206
    %v209 = vld [vmem:[%s3] sm:$0xff]
    %v210 = vld [vmem:[%s3 + $0x8] sm:$0xff]
    %v211 = vld [vmem:[%s3 + $0x10] sm:$0xff]
    %v212 = vld [vmem:[%s3 + $0x18] sm:$0xff]
    %v213 = vld [vmem:[%s4] sm:$0x1]
    %v215 = vperm.slane %v213, 0
    %v218 = vsel %vm150, %v207, 0
    %v221 = vsel %vm150, %v208, 0
    %223 = vmatpush.msra.mxu0 0.0
    %224 = vmatpush.msra.mxu0 0.0
    %225 = vmatpush.msra.mxu0 0.0
    %226 = vmatpush.msra.mxu0 0.0
    %227 = vmatpush.msra.mxu0 0.0
    %228 = vmatpush.msra.mxu0 0.0
    %229 = vmatpush.msra.mxu0 0.0
    %230 = vmatpush.msra.mxu0 0.0
    %231 = vmatpush.msra.mxu0 0.0
    %232 = vmatpush.msra.mxu0 0.0
    %233 = vmatpush.msra.mxu0 0.0
    %234 = vmatpush.msra.mxu0 0.0
    %235 = vmatpush.msra.mxu0 %v212
    %236 = vmatpush.msra.mxu0 %v211
    %237 = vmatpush.msra.mxu0 %v210
    %238 = vmatpush.msra.mxu0 %v209
    %239 = vmatmul.f32.gmra.mxu0 %v218
    %v240 = vpop.f32.mrf.mxu0
    %v241 = vadd.f32 %v215, %v240
    %242 = vmatmul.f32.gmra.mxu0 %v221
    %v243 = vpop.f32.mrf.mxu0
    %v244 = vadd.f32 %v215, %v243
    %245 = vdwg.mxu0
    %vm248 = vcmask 1041408
    %v249 = vrot.slane %v241, 6
    %v250 = vrot.slane %v244, 6
    %v251 = vsel %vm248, %v249, %v250
    %vm254 = vcmask 1043456
    %v255 = vrot.slane %v241, 4
    %v256 = vrot.slane %v244, 4
    %v257 = vsel %vm254, %v255, %v256
    %vm260 = vcmask 1045504
    %v261 = vrot.slane %v241, 2
    %v262 = vrot.slane %v244, 2
    %v263 = vsel %vm260, %v261, %v262
    %v266 = vsel %vm248, %v244, %v249
    %v267 = vsel %vm254, %v251, %v255
    %v268 = vsel %vm260, %v257, %v261
    %274 = vrot.lane.b32.xlu0 %v54, 32
    %v275 = vpop.permute.xlu0 %274
    %276 = vrot.lane.b32.xlu0 %v55, 32
    %v277 = vpop.permute.xlu0 %276
    %278 = vrot.lane.b32.xlu0 %v56, 32
    %v279 = vpop.permute.xlu0 %278
    %280 = vrot.lane.b32.xlu0 %v57, 32
    %v281 = vpop.permute.xlu0 %280
    %282 = vrot.lane.b32.xlu0 %v58, 32
    %v283 = vpop.permute.xlu0 %282
    %v289 = vmul.f32 %v241, %v275
    %v290 = vmul.f32 %v266, %v277
    %v291 = vmul.f32 %v267, %v279
    %v292 = vmul.f32 %v268, %v281
    %v293 = vmul.f32 %v263, %v283
    %294 = vrot.lane.b32.xlu0 %v54, 64
    %v295 = vpop.permute.xlu0 %294
    %296 = vrot.lane.b32.xlu0 %v55, 64
    %v297 = vpop.permute.xlu0 %296
    %298 = vrot.lane.b32.xlu0 %v56, 64
    %v299 = vpop.permute.xlu0 %298
    %300 = vrot.lane.b32.xlu0 %v57, 64
    %v301 = vpop.permute.xlu0 %300
    %302 = vrot.lane.b32.xlu0 %v58, 64
    %v303 = vpop.permute.xlu0 %302
    %v309 = vmul.f32 %v241, %v295
    %v310 = vmul.f32 %v266, %v297
    %v311 = vmul.f32 %v267, %v299
    %v312 = vmul.f32 %v268, %v301
    %v313 = vmul.f32 %v263, %v303
    %319 = vrot.lane.b32.xlu0 %v289, 96
    %v320 = vpop.permute.xlu0 %319
    %321 = vrot.lane.b32.xlu0 %v290, 96
    %v322 = vpop.permute.xlu0 %321
    %323 = vrot.lane.b32.xlu0 %v291, 96
    %v324 = vpop.permute.xlu0 %323
    %325 = vrot.lane.b32.xlu0 %v292, 96
    %v326 = vpop.permute.xlu0 %325
    %327 = vrot.lane.b32.xlu0 %v293, 96
    %v328 = vpop.permute.xlu0 %327
    %v329 = vsel %vm150, %v241, 0
    %v331 = vsel %vm150, %v244, 0
    %v333 = vsel %vm150, %v320, 0
    %v335 = vsel %vm150, %v322, 0
    %v337 = vsel %vm150, %v324, 0
    %v339 = vsel %vm150, %v326, 0
    %v341 = vsel %vm150, %v328, 0
    %343 = vmatpush.xpose.msra.mxu0 0.0
    %344 = vmatpush.xpose.msra.mxu0 0.0
    %345 = vmatpush.xpose.msra.mxu0 0.0
    %346 = vmatpush.xpose.msra.mxu0 0.0
    %347 = vmatpush.xpose.msra.mxu0 0.0
    %348 = vmatpush.xpose.msra.mxu0 0.0
    %349 = vmatpush.xpose.msra.mxu0 0.0
    %350 = vmatpush.xpose.msra.mxu0 0.0
    %351 = vmatpush.xpose.msra.mxu0 0.0
    %352 = vmatpush.xpose.msra.mxu0 0.0
    %353 = vmatpush.xpose.msra.mxu0 0.0
    %354 = vmatpush.xpose.msra.mxu0 %v341
    %355 = vmatpush.xpose.msra.mxu0 %v339
    %356 = vmatpush.xpose.msra.mxu0 %v337
    %357 = vmatpush.xpose.msra.mxu0 %v335
    %358 = vmatpush.xpose.msra.mxu0 %v333
    %359 = vmatmul.f32.gmra.mxu0 %v329
    %v360 = vpop.f32.mrf.mxu0
    %v361 = vadd.f32 %v59, %v360
    %362 = vmatmul.f32.gmra.mxu0 %v331
    %v363 = vpop.f32.mrf.mxu0
    %v364 = vadd.f32 %v60, %v363
    %365 = vdwg.mxu0
    %vm366 = vcmask 326656
    %v367 = vsel %vm366, %v361, -inf
    %368 = vmax.xlane.f32.xlu0 %v367
    %v369 = vpop.xlane.xlu0 %368
    %vm370 = vcmask 320512
    %v371 = vsel %vm370, %v364, -inf
    %372 = vmax.xlane.f32.xlu0 %v371
    %v373 = vpop.xlane.xlu0 %372
    %v374 = vsub.f32 %v361, %v369
    %v375 = vsub.f32 %v364, %v373
    %v376 = vmul.f32 %v374, 1.442695
    %v377 = vpow.pop %v376
    %v378 = vmul.f32 %v375, 1.442695
    %v379 = vpow.pop %v378
    %v381 = vsel %vm366, %v377, 0
    %v384 = vsel %vm366, %v379, 0
    %386 = vmatpush.msra.mxu0 0.0
    %387 = vmatpush.msra.mxu0 0.0
    %388 = vmatpush.msra.mxu0 0.0
    %389 = vmatpush.msra.mxu0 0.0
    %390 = vmatpush.msra.mxu0 0.0
    %391 = vmatpush.msra.mxu0 0.0
    %392 = vmatpush.msra.mxu0 0.0
    %393 = vmatpush.msra.mxu0 0.0
    %394 = vmatpush.msra.mxu0 0.0
    %395 = vmatpush.msra.mxu0 0.0
    %396 = vmatpush.msra.mxu0 0.0
    %397 = vmatpush.msra.mxu0 %v65
    %398 = vmatpush.msra.mxu0 %v64
    %399 = vmatpush.msra.mxu0 %v63
    %400 = vmatpush.msra.mxu0 %v62
    %401 = vmatpush.msra.mxu0 %v61
    %402 = vmatmul.f32.gmra.mxu0 %v381
    %v403 = vpop.f32.mrf.mxu0
    %v404 = vadd.f32 0.0, %v403
    %405 = vmatmul.f32.gmra.mxu0 %v384
    %v406 = vpop.f32.mrf.mxu0
    %v407 = vadd.f32 0.0, %v406
    %408 = vdwg.mxu0
    %v409 = vrcp.pop %v404
    %v410 = vmul.f32 %v404, %v409
    %v411 = vsub.f32 1.0, %v410
    %v412 = vmul.f32 %v409, %v411
    %v413 = vadd.f32 %v409, %v412
    %vm414 = vweird.f32 %v404
    %vm415 = vweird.f32 %v409
    %vm416 = vmor %vm414, %vm415
    %v417 = vsel %vm416, %v409, %v413
    %v418 = vand.u32 2147483647, %v404
    %vm419 = vcmp.eq.f32.partialorder %v418, 8.507059e+37
    %v420 = vand.u32 %v404, 2147483648
    %v421 = vor.u32 1.1754944e-38, %v420
    %v422 = vsel %vm419, %v421, %v417
    %v423 = vmul.f32 %v377, %v422
    %v424 = vrcp.pop %v407
    %v425 = vmul.f32 %v407, %v424
    %v426 = vsub.f32 1.0, %v425
    %v427 = vmul.f32 %v424, %v426
    %v428 = vadd.f32 %v424, %v427
    %vm429 = vweird.f32 %v407
    %vm430 = vweird.f32 %v424
    %vm431 = vmor %vm429, %vm430
    %v432 = vsel %vm431, %v424, %v428
    %v433 = vand.u32 2147483647, %v407
    %vm434 = vcmp.eq.f32.partialorder %v433, 8.507059e+37
    %v435 = vand.u32 %v407, 2147483648
    %v436 = vor.u32 1.1754944e-38, %v435
    %v437 = vsel %vm434, %v436, %v432
    %v438 = vmul.f32 %v379, %v437
    %444 = vrot.lane.b32.xlu0 %v309, 64
    %v445 = vpop.permute.xlu0 %444
    %446 = vrot.lane.b32.xlu0 %v310, 64
    %v447 = vpop.permute.xlu0 %446
    %448 = vrot.lane.b32.xlu0 %v311, 64
    %v449 = vpop.permute.xlu0 %448
    %450 = vrot.lane.b32.xlu0 %v312, 64
    %v451 = vpop.permute.xlu0 %450
    %452 = vrot.lane.b32.xlu0 %v313, 64
    %v453 = vpop.permute.xlu0 %452
    %v460 = vsel %vm366, %v423, 0
    %v463 = vsel %vm366, %v438, 0
    %465 = vmatpush.msra.mxu0 0.0
    %466 = vmatpush.msra.mxu0 0.0
    %467 = vmatpush.msra.mxu0 0.0
    %468 = vmatpush.msra.mxu0 0.0
    %469 = vmatpush.msra.mxu0 0.0
    %470 = vmatpush.msra.mxu0 0.0
    %471 = vmatpush.msra.mxu0 0.0
    %472 = vmatpush.msra.mxu0 0.0
    %473 = vmatpush.msra.mxu0 0.0
    %474 = vmatpush.msra.mxu0 0.0
    %475 = vmatpush.msra.mxu0 0.0
    %476 = vmatpush.msra.mxu0 %v453
    %477 = vmatpush.msra.mxu0 %v451
    %478 = vmatpush.msra.mxu0 %v449
    %479 = vmatpush.msra.mxu0 %v447
    %480 = vmatpush.msra.mxu0 %v445
    %481 = vmatmul.f32.gmra.mxu0 %v460
    %v482 = vpop.f32.mrf.mxu0
    %v483 = vadd.f32 0.0, %v482
    %484 = vmatmul.f32.gmra.mxu0 %v463
    %v485 = vpop.f32.mrf.mxu0
    %v486 = vadd.f32 0.0, %v485
    %487 = vdwg.mxu0
    %v488 = vld [vmem:[%s5] sm:$0xff]
    %v489 = vld [vmem:[%s5 + $0x8] sm:$0xff]
    %v490 = vld [vmem:[%s5 + $0x10] sm:$0xff]
    %v491 = vld [vmem:[%s5 + $0x18] sm:$0xff]
    %v492 = vperm.slane %v149, 4
    %v494 = vsel %vm150, %v483, 0
    %v497 = vsel %vm150, %v486, 0
    %499 = vmatpush.msra.mxu0 0.0
    %500 = vmatpush.msra.mxu0 0.0
    %501 = vmatpush.msra.mxu0 0.0
    %502 = vmatpush.msra.mxu0 0.0
    %503 = vmatpush.msra.mxu0 0.0
    %504 = vmatpush.msra.mxu0 0.0
    %505 = vmatpush.msra.mxu0 0.0
    %506 = vmatpush.msra.mxu0 0.0
    %507 = vmatpush.msra.mxu0 0.0
    %508 = vmatpush.msra.mxu0 0.0
    %509 = vmatpush.msra.mxu0 0.0
    %510 = vmatpush.msra.mxu0 0.0
    %511 = vmatpush.msra.mxu0 %v491
    %512 = vmatpush.msra.mxu0 %v490
    %513 = vmatpush.msra.mxu0 %v489
    %514 = vmatpush.msra.mxu0 %v488
    %515 = vmatmul.f32.gmra.mxu0 %v494
    %v516 = vpop.f32.mrf.mxu0
    %v517 = vadd.f32 %v492, %v516
    %518 = vmatmul.f32.gmra.mxu0 %v497
    %v519 = vpop.f32.mrf.mxu0
    %v520 = vadd.f32 %v492, %v519
    %521 = vdwg.mxu0
    %v522 = vadd.f32 %v144, %v517
    %v523 = vadd.f32 %v147, %v520
    %v524 = vsel %vm150, %v522, 0.0
    %525 = vadd.xlane.f32.xlu0 %v524
    %v526 = vpop.xlane.xlu0 %525
    %v527 = vsel %vm154, %v523, 0.0
    %528 = vadd.xlane.f32.xlu0 %v527
    %v529 = vpop.xlane.xlu0 %528
    %v530 = vmul.f32 %v526, %v164
    %v531 = vmul.f32 %v529, %v164
    %v532 = vsub.f32 %v522, %v530
    %v533 = vsub.f32 %v523, %v531
    %v534 = vmul.f32 %v532, %v532
    %v535 = vmul.f32 %v533, %v533
    %v536 = vsel %vm150, %v534, 0.0
    %537 = vadd.xlane.f32.xlu0 %v536
    %v538 = vpop.xlane.xlu0 %537
    %v539 = vsel %vm154, %v535, 0.0
    %540 = vadd.xlane.f32.xlu0 %v539
    %v541 = vpop.xlane.xlu0 %540
    %v542 = vmul.f32 %v538, %v164
    %v543 = vmul.f32 %v541, %v164
    %v544 = vadd.f32 %v542, 1e-06
    %v545 = vadd.f32 %v543, 1e-06
    %v546 = vrsqrt.pop %v544
    %v547 = vmul.f32 %v546, %v544
    %v548 = vmul.f32 %v547, %v546
    %v549 = vmul.f32 0.5, %v548
    %v550 = vsub.f32 1.5, %v549
    %v551 = vmul.f32 %v546, %v550
    %vm552 = vweird.f32 %v544
    %vm553 = vweird.f32 %v546
    %vm554 = vmor %vm552, %vm553
    %v555 = vsel %vm554, %v546, %v551
    %v556 = vrsqrt.pop %v545
    %v557 = vmul.f32 %v556, %v545
    %v558 = vmul.f32 %v557, %v556
    %v559 = vmul.f32 0.5, %v558
    %v560 = vsub.f32 1.5, %v559
    %v561 = vmul.f32 %v556, %v560
    %vm562 = vweird.f32 %v545
    %vm563 = vweird.f32 %v556
    %vm564 = vmor %vm562, %vm563
    %v565 = vsel %vm564, %v556, %v561
    %v566 = vmul.f32 %v532, %v555
    %v567 = vmul.f32 %v533, %v565
    %v568 = vperm.slane %v149, 2
    %v569 = vmul.f32 %v566, %v568
    %v570 = vmul.f32 %v567, %v568
    %v571 = vperm.slane %v149, 3
    %v572 = vadd.f32 %v569, %v571
    %v573 = vadd.f32 %v570, %v571
    %v574 = vld [vmem:[%s6] sm:$0xff]
    %v575 = vld [vmem:[%s6 + $0x8] sm:$0xff]
    %v576 = vld [vmem:[%s6 + $0x10] sm:$0xff]
    %v577 = vld [vmem:[%s6 + $0x18] sm:$0xff]
    %v578 = vld [vmem:[%s7] sm:$0x1]
    %v580 = vperm.slane %v578, 0
    %v583 = vsel %vm150, %v572, 0
    %v586 = vsel %vm150, %v573, 0
    %588 = vmatpush.msra.mxu0 0.0
    %589 = vmatpush.msra.mxu0 0.0
    %590 = vmatpush.msra.mxu0 0.0
    %591 = vmatpush.msra.mxu0 0.0
    %592 = vmatpush.msra.mxu0 0.0
    %593 = vmatpush.msra.mxu0 0.0
    %594 = vmatpush.msra.mxu0 0.0
    %595 = vmatpush.msra.mxu0 0.0
    %596 = vmatpush.msra.mxu0 0.0
    %597 = vmatpush.msra.mxu0 0.0
    %598 = vmatpush.msra.mxu0 0.0
    %599 = vmatpush.msra.mxu0 0.0
    %600 = vmatpush.msra.mxu0 %v577
    %601 = vmatpush.msra.mxu0 %v576
    %602 = vmatpush.msra.mxu0 %v575
    %603 = vmatpush.msra.mxu0 %v574
    %604 = vmatmul.f32.gmra.mxu0 %v583
    %v605 = vpop.f32.mrf.mxu0
    %v606 = vadd.f32 %v580, %v605
    %607 = vmatmul.f32.gmra.mxu0 %v586
    %v608 = vpop.f32.mrf.mxu0
    %v609 = vadd.f32 %v580, %v608
    %610 = vdwg.mxu0
    %v611 = vmul.f32 %v606, 0.5
    %v612 = vmul.f32 %v609, 0.5
    %v613 = vmul.f32 %v606, 0.044715
    %v614 = vmul.f32 %v609, 0.044715
    %v615 = vmul.f32 %v613, %v606
    %v616 = vmul.f32 %v614, %v609
    %v617 = vmul.f32 %v615, %v606
    %v618 = vmul.f32 %v616, %v609
    %v619 = vadd.f32 %v606, %v617
    %v620 = vadd.f32 %v609, %v618
    %v621 = vmul.f32 %v619, 0.7978846
    %v622 = vmul.f32 %v620, 0.7978846
    %v623 = vtanh.pop %v621
    %v624 = vtanh.pop %v622
    %v625 = vadd.f32 %v623, 1.0
    %v626 = vadd.f32 %v624, 1.0
    %v627 = vmul.f32 %v611, %v625
    %v628 = vmul.f32 %v612, %v626
    %v629 = vld [vmem:[%s8] sm:$0xff]
    %v630 = vld [vmem:[%s8 + $0x8] sm:$0xff]
    %v631 = vld [vmem:[%s8 + $0x10] sm:$0xff]
    %v632 = vld [vmem:[%s8 + $0x18] sm:$0xff]
    %v633 = vld [vmem:[%s8 + $0x20] sm:$0xff]
    %v634 = vld [vmem:[%s8 + $0x28] sm:$0xff]
    %v635 = vld [vmem:[%s8 + $0x30] sm:$0xff]
    %v636 = vld [vmem:[%s8 + $0x38] sm:$0xff]
    %v637 = vld [vmem:[%s8 + $0x40] sm:$0xff]
    %v638 = vld [vmem:[%s8 + $0x48] sm:$0xff]
    %v639 = vld [vmem:[%s8 + $0x50] sm:$0xff]
    %v640 = vld [vmem:[%s8 + $0x58] sm:$0xff]
    %v641 = vld [vmem:[%s8 + $0x60] sm:$0xff]
    %v642 = vld [vmem:[%s8 + $0x68] sm:$0xff]
    %v643 = vld [vmem:[%s8 + $0x70] sm:$0xff]
    %v644 = vld [vmem:[%s8 + $0x78] sm:$0xff]
    %v645 = vperm.slane %v149, 5
    %646 = vmatpush.msra.mxu0 %v644
    %647 = vmatpush.msra.mxu0 %v643
    %648 = vmatpush.msra.mxu0 %v642
    %649 = vmatpush.msra.mxu0 %v641
    %650 = vmatpush.msra.mxu0 %v640
    %651 = vmatpush.msra.mxu0 %v639
    %652 = vmatpush.msra.mxu0 %v638
    %653 = vmatpush.msra.mxu0 %v637
    %654 = vmatpush.msra.mxu0 %v636
    %655 = vmatpush.msra.mxu0 %v635
    %656 = vmatpush.msra.mxu0 %v634
    %657 = vmatpush.msra.mxu0 %v633
    %658 = vmatpush.msra.mxu0 %v632
    %659 = vmatpush.msra.mxu0 %v631
    %660 = vmatpush.msra.mxu0 %v630
    %661 = vmatpush.msra.mxu0 %v629
    %662 = vmatmul.f32.gmra.mxu0 %v627
    %v663 = vpop.f32.mrf.mxu0
    %v664 = vadd.f32 %v645, %v663
    %665 = vmatmul.f32.gmra.mxu0 %v628
    %v666 = vpop.f32.mrf.mxu0
    %v667 = vadd.f32 %v645, %v666
    %668 = vdwg.mxu0
    %v669 = vadd.f32 %v522, %v664
    %v670 = vadd.f32 %v523, %v667
    %s671 = scalar_lea.vmem %s9, 8
    %v672 = vld [vmem:[%s671] sm:$0x3f]
    %v673 = vsel %vm150, %v669, 0.0
    %674 = vadd.xlane.f32.xlu0 %v673
    %v675 = vpop.xlane.xlu0 %674
    %v676 = vsel %vm154, %v670, 0.0
    %677 = vadd.xlane.f32.xlu0 %v676
    %v678 = vpop.xlane.xlu0 %677
    %v679 = vmul.f32 %v675, %v164
    %v680 = vmul.f32 %v678, %v164
    %v681 = vsub.f32 %v669, %v679
    %v682 = vsub.f32 %v670, %v680
    %v683 = vmul.f32 %v681, %v681
    %v684 = vmul.f32 %v682, %v682
    %v685 = vsel %vm150, %v683, 0.0
    %686 = vadd.xlane.f32.xlu0 %v685
    %v687 = vpop.xlane.xlu0 %686
    %v688 = vsel %vm154, %v684, 0.0
    %689 = vadd.xlane.f32.xlu0 %v688
    %v690 = vpop.xlane.xlu0 %689
    %v691 = vmul.f32 %v687, %v164
    %v692 = vmul.f32 %v690, %v164
    %v693 = vadd.f32 %v691, 1e-06
    %v694 = vadd.f32 %v692, 1e-06
    %v695 = vrsqrt.pop %v693
    %v696 = vmul.f32 %v695, %v693
    %v697 = vmul.f32 %v696, %v695
    %v698 = vmul.f32 0.5, %v697
    %v699 = vsub.f32 1.5, %v698
    %v700 = vmul.f32 %v695, %v699
    %vm701 = vweird.f32 %v693
    %vm702 = vweird.f32 %v695
    %vm703 = vmor %vm701, %vm702
    %v704 = vsel %vm703, %v695, %v700
    %v705 = vrsqrt.pop %v694
    %v706 = vmul.f32 %v705, %v694
    %v707 = vmul.f32 %v706, %v705
    %v708 = vmul.f32 0.5, %v707
    %v709 = vsub.f32 1.5, %v708
    %v710 = vmul.f32 %v705, %v709
    %vm711 = vweird.f32 %v694
    %vm712 = vweird.f32 %v705
    %vm713 = vmor %vm711, %vm712
    %v714 = vsel %vm713, %v705, %v710
    %v715 = vmul.f32 %v681, %v704
    %v716 = vmul.f32 %v682, %v714
    %v717 = vperm.slane %v672, 0
    %v718 = vmul.f32 %v715, %v717
    %v719 = vmul.f32 %v716, %v717
    %v720 = vperm.slane %v672, 1
    %v721 = vadd.f32 %v718, %v720
    %v722 = vadd.f32 %v719, %v720
    %s723 = scalar_lea.vmem %s3, 32
    %v724 = vld [vmem:[%s723] sm:$0xff]
    %v725 = vld [vmem:[%s723 + $0x8] sm:$0xff]
    %v726 = vld [vmem:[%s723 + $0x10] sm:$0xff]
    %v727 = vld [vmem:[%s723 + $0x18] sm:$0xff]
    %s728 = scalar_lea.vmem %s4, 1
    %v729 = vld [vmem:[%s728] sm:$0x1]
    %v731 = vperm.slane %v729, 0
    %v734 = vsel %vm150, %v721, 0
    %v737 = vsel %vm150, %v722, 0
    %739 = vmatpush.msra.mxu0 0.0
    %740 = vmatpush.msra.mxu0 0.0
    %741 = vmatpush.msra.mxu0 0.0
    %742 = vmatpush.msra.mxu0 0.0
    %743 = vmatpush.msra.mxu0 0.0
    %744 = vmatpush.msra.mxu0 0.0
    %745 = vmatpush.msra.mxu0 0.0
    %746 = vmatpush.msra.mxu0 0.0
    %747 = vmatpush.msra.mxu0 0.0
    %748 = vmatpush.msra.mxu0 0.0
    %749 = vmatpush.msra.mxu0 0.0
    %750 = vmatpush.msra.mxu0 0.0
    %751 = vmatpush.msra.mxu0 %v727
    %752 = vmatpush.msra.mxu0 %v726
    %753 = vmatpush.msra.mxu0 %v725
    %754 = vmatpush.msra.mxu0 %v724
    %755 = vmatmul.f32.gmra.mxu0 %v734
    %v756 = vpop.f32.mrf.mxu0
    %v757 = vadd.f32 %v731, %v756
    %758 = vmatmul.f32.gmra.mxu0 %v737
    %v759 = vpop.f32.mrf.mxu0
    %v760 = vadd.f32 %v731, %v759
    %761 = vdwg.mxu0
    %v764 = vrot.slane %v757, 6
    %v765 = vrot.slane %v760, 6
    %v766 = vsel %vm248, %v764, %v765
    %v769 = vrot.slane %v757, 4
    %v770 = vrot.slane %v760, 4
    %v771 = vsel %vm254, %v769, %v770
    %v774 = vrot.slane %v757, 2
    %v775 = vrot.slane %v760, 2
    %v776 = vsel %vm260, %v774, %v775
    %v779 = vsel %vm248, %v760, %v764
    %v780 = vsel %vm254, %v766, %v769
    %v781 = vsel %vm260, %v771, %v774
    %v782 = vmul.f32 %v757, %v275
    %v783 = vmul.f32 %v779, %v277
    %v784 = vmul.f32 %v780, %v279
    %v785 = vmul.f32 %v781, %v281
    %v786 = vmul.f32 %v776, %v283
    %v787 = vmul.f32 %v757, %v295
    %v788 = vmul.f32 %v779, %v297
    %v789 = vmul.f32 %v780, %v299
    %v790 = vmul.f32 %v781, %v301
    %v791 = vmul.f32 %v776, %v303
    %797 = vrot.lane.b32.xlu0 %v782, 96
    %v798 = vpop.permute.xlu0 %797
    %799 = vrot.lane.b32.xlu0 %v783, 96
    %v800 = vpop.permute.xlu0 %799
    %801 = vrot.lane.b32.xlu0 %v784, 96
    %v802 = vpop.permute.xlu0 %801
    %803 = vrot.lane.b32.xlu0 %v785, 96
    %v804 = vpop.permute.xlu0 %803
    %805 = vrot.lane.b32.xlu0 %v786, 96
    %v806 = vpop.permute.xlu0 %805
    %v807 = vsel %vm150, %v757, 0
    %v809 = vsel %vm150, %v760, 0
    %v811 = vsel %vm150, %v798, 0
    %v813 = vsel %vm150, %v800, 0
    %v815 = vsel %vm150, %v802, 0
    %v817 = vsel %vm150, %v804, 0
    %v819 = vsel %vm150, %v806, 0
    %821 = vmatpush.xpose.msra.mxu0 0.0
    %822 = vmatpush.xpose.msra.mxu0 0.0
    %823 = vmatpush.xpose.msra.mxu0 0.0
    %824 = vmatpush.xpose.msra.mxu0 0.0
    %825 = vmatpush.xpose.msra.mxu0 0.0
    %826 = vmatpush.xpose.msra.mxu0 0.0
    %827 = vmatpush.xpose.msra.mxu0 0.0
    %828 = vmatpush.xpose.msra.mxu0 0.0
    %829 = vmatpush.xpose.msra.mxu0 0.0
    %830 = vmatpush.xpose.msra.mxu0 0.0
    %831 = vmatpush.xpose.msra.mxu0 0.0
    %832 = vmatpush.xpose.msra.mxu0 %v819
    %833 = vmatpush.xpose.msra.mxu0 %v817
    %834 = vmatpush.xpose.msra.mxu0 %v815
    %835 = vmatpush.xpose.msra.mxu0 %v813
    %836 = vmatpush.xpose.msra.mxu0 %v811
    %837 = vmatmul.f32.gmra.mxu0 %v807
    %v838 = vpop.f32.mrf.mxu0
    %v839 = vadd.f32 %v59, %v838
    %840 = vmatmul.f32.gmra.mxu0 %v809
    %v841 = vpop.f32.mrf.mxu0
    %v842 = vadd.f32 %v60, %v841
    %843 = vdwg.mxu0
    %v844 = vsel %vm366, %v839, -inf
    %845 = vmax.xlane.f32.xlu0 %v844
    %v846 = vpop.xlane.xlu0 %845
    %v847 = vsel %vm370, %v842, -inf
    %848 = vmax.xlane.f32.xlu0 %v847
    %v849 = vpop.xlane.xlu0 %848
    %v850 = vsub.f32 %v839, %v846
    %v851 = vsub.f32 %v842, %v849
    %v852 = vmul.f32 %v850, 1.442695
    %v853 = vpow.pop %v852
    %v854 = vmul.f32 %v851, 1.442695
    %v855 = vpow.pop %v854
    %v857 = vsel %vm366, %v853, 0
    %v860 = vsel %vm366, %v855, 0
    %862 = vmatpush.msra.mxu0 0.0
    %863 = vmatpush.msra.mxu0 0.0
    %864 = vmatpush.msra.mxu0 0.0
    %865 = vmatpush.msra.mxu0 0.0
    %866 = vmatpush.msra.mxu0 0.0
    %867 = vmatpush.msra.mxu0 0.0
    %868 = vmatpush.msra.mxu0 0.0
    %869 = vmatpush.msra.mxu0 0.0
    %870 = vmatpush.msra.mxu0 0.0
    %871 = vmatpush.msra.mxu0 0.0
    %872 = vmatpush.msra.mxu0 0.0
    %873 = vmatpush.msra.mxu0 %v65
    %874 = vmatpush.msra.mxu0 %v64
    %875 = vmatpush.msra.mxu0 %v63
    %876 = vmatpush.msra.mxu0 %v62
    %877 = vmatpush.msra.mxu0 %v61
    %878 = vmatmul.f32.gmra.mxu0 %v857
    %v879 = vpop.f32.mrf.mxu0
    %v880 = vadd.f32 0.0, %v879
    %881 = vmatmul.f32.gmra.mxu0 %v860
    %v882 = vpop.f32.mrf.mxu0
    %v883 = vadd.f32 0.0, %v882
    %884 = vdwg.mxu0
    %v885 = vrcp.pop %v880
    %v886 = vmul.f32 %v880, %v885
    %v887 = vsub.f32 1.0, %v886
    %v888 = vmul.f32 %v885, %v887
    %v889 = vadd.f32 %v885, %v888
    %vm890 = vweird.f32 %v880
    %vm891 = vweird.f32 %v885
    %vm892 = vmor %vm890, %vm891
    %v893 = vsel %vm892, %v885, %v889
    %v894 = vand.u32 2147483647, %v880
    %vm895 = vcmp.eq.f32.partialorder %v894, 8.507059e+37
    %v896 = vand.u32 %v880, 2147483648
    %v897 = vor.u32 1.1754944e-38, %v896
    %v898 = vsel %vm895, %v897, %v893
    %v899 = vmul.f32 %v853, %v898
    %v900 = vrcp.pop %v883
    %v901 = vmul.f32 %v883, %v900
    %v902 = vsub.f32 1.0, %v901
    %v903 = vmul.f32 %v900, %v902
    %v904 = vadd.f32 %v900, %v903
    %vm905 = vweird.f32 %v883
    %vm906 = vweird.f32 %v900
    %vm907 = vmor %vm905, %vm906
    %v908 = vsel %vm907, %v900, %v904
    %v909 = vand.u32 2147483647, %v883
    %vm910 = vcmp.eq.f32.partialorder %v909, 8.507059e+37
    %v911 = vand.u32 %v883, 2147483648
    %v912 = vor.u32 1.1754944e-38, %v911
    %v913 = vsel %vm910, %v912, %v908
    %v914 = vmul.f32 %v855, %v913
    %920 = vrot.lane.b32.xlu0 %v787, 64
    %v921 = vpop.permute.xlu0 %920
    %922 = vrot.lane.b32.xlu0 %v788, 64
    %v923 = vpop.permute.xlu0 %922
    %924 = vrot.lane.b32.xlu0 %v789, 64
    %v925 = vpop.permute.xlu0 %924
    %926 = vrot.lane.b32.xlu0 %v790, 64
    %v927 = vpop.permute.xlu0 %926
    %928 = vrot.lane.b32.xlu0 %v791, 64
    %v929 = vpop.permute.xlu0 %928
    %v936 = vsel %vm366, %v899, 0
    %v939 = vsel %vm366, %v914, 0
    %941 = vmatpush.msra.mxu0 0.0
    %942 = vmatpush.msra.mxu0 0.0
    %943 = vmatpush.msra.mxu0 0.0
    %944 = vmatpush.msra.mxu0 0.0
    %945 = vmatpush.msra.mxu0 0.0
    %946 = vmatpush.msra.mxu0 0.0
    %947 = vmatpush.msra.mxu0 0.0
    %948 = vmatpush.msra.mxu0 0.0
    %949 = vmatpush.msra.mxu0 0.0
    %950 = vmatpush.msra.mxu0 0.0
    %951 = vmatpush.msra.mxu0 0.0
    %952 = vmatpush.msra.mxu0 %v929
    %953 = vmatpush.msra.mxu0 %v927
    %954 = vmatpush.msra.mxu0 %v925
    %955 = vmatpush.msra.mxu0 %v923
    %956 = vmatpush.msra.mxu0 %v921
    %957 = vmatmul.f32.gmra.mxu0 %v936
    %v958 = vpop.f32.mrf.mxu0
    %v959 = vadd.f32 0.0, %v958
    %960 = vmatmul.f32.gmra.mxu0 %v939
    %v961 = vpop.f32.mrf.mxu0
    %v962 = vadd.f32 0.0, %v961
    %963 = vdwg.mxu0
    %s964 = scalar_lea.vmem %s5, 32
    %v965 = vld [vmem:[%s964] sm:$0xff]
    %v966 = vld [vmem:[%s964 + $0x8] sm:$0xff]
    %v967 = vld [vmem:[%s964 + $0x10] sm:$0xff]
    %v968 = vld [vmem:[%s964 + $0x18] sm:$0xff]
    %v969 = vperm.slane %v672, 4
    %v971 = vsel %vm150, %v959, 0
    %v974 = vsel %vm150, %v962, 0
    %976 = vmatpush.msra.mxu0 0.0
    %977 = vmatpush.msra.mxu0 0.0
    %978 = vmatpush.msra.mxu0 0.0
    %979 = vmatpush.msra.mxu0 0.0
    %980 = vmatpush.msra.mxu0 0.0
    %981 = vmatpush.msra.mxu0 0.0
    %982 = vmatpush.msra.mxu0 0.0
    %983 = vmatpush.msra.mxu0 0.0
    %984 = vmatpush.msra.mxu0 0.0
    %985 = vmatpush.msra.mxu0 0.0
    %986 = vmatpush.msra.mxu0 0.0
    %987 = vmatpush.msra.mxu0 0.0
    %988 = vmatpush.msra.mxu0 %v968
    %989 = vmatpush.msra.mxu0 %v967
    %990 = vmatpush.msra.mxu0 %v966
    %991 = vmatpush.msra.mxu0 %v965
    %992 = vmatmul.f32.gmra.mxu0 %v971
    %v993 = vpop.f32.mrf.mxu0
    %v994 = vadd.f32 %v969, %v993
    %995 = vmatmul.f32.gmra.mxu0 %v974
    %v996 = vpop.f32.mrf.mxu0
    %v997 = vadd.f32 %v969, %v996
    %998 = vdwg.mxu0
    %v999 = vadd.f32 %v669, %v994
    %v1000 = vadd.f32 %v670, %v997
    %v1001 = vsel %vm150, %v999, 0.0
    %1002 = vadd.xlane.f32.xlu0 %v1001
    %v1003 = vpop.xlane.xlu0 %1002
    %v1004 = vsel %vm154, %v1000, 0.0
    %1005 = vadd.xlane.f32.xlu0 %v1004
    %v1006 = vpop.xlane.xlu0 %1005
    %v1007 = vmul.f32 %v1003, %v164
    %v1008 = vmul.f32 %v1006, %v164
    %v1009 = vsub.f32 %v999, %v1007
    %v1010 = vsub.f32 %v1000, %v1008
    %v1011 = vmul.f32 %v1009, %v1009
    %v1012 = vmul.f32 %v1010, %v1010
    %v1013 = vsel %vm150, %v1011, 0.0
    %1014 = vadd.xlane.f32.xlu0 %v1013
    %v1015 = vpop.xlane.xlu0 %1014
    %v1016 = vsel %vm154, %v1012, 0.0
    %1017 = vadd.xlane.f32.xlu0 %v1016
    %v1018 = vpop.xlane.xlu0 %1017
    %v1019 = vmul.f32 %v1015, %v164
    %v1020 = vmul.f32 %v1018, %v164
    %v1021 = vadd.f32 %v1019, 1e-06
    %v1022 = vadd.f32 %v1020, 1e-06
    %v1023 = vrsqrt.pop %v1021
    %v1024 = vmul.f32 %v1023, %v1021
    %v1025 = vmul.f32 %v1024, %v1023
    %v1026 = vmul.f32 0.5, %v1025
    %v1027 = vsub.f32 1.5, %v1026
    %v1028 = vmul.f32 %v1023, %v1027
    %vm1029 = vweird.f32 %v1021
    %vm1030 = vweird.f32 %v1023
    %vm1031 = vmor %vm1029, %vm1030
    %v1032 = vsel %vm1031, %v1023, %v1028
    %v1033 = vrsqrt.pop %v1022
    %v1034 = vmul.f32 %v1033, %v1022
    %v1035 = vmul.f32 %v1034, %v1033
    %v1036 = vmul.f32 0.5, %v1035
    %v1037 = vsub.f32 1.5, %v1036
    %v1038 = vmul.f32 %v1033, %v1037
    %vm1039 = vweird.f32 %v1022
    %vm1040 = vweird.f32 %v1033
    %vm1041 = vmor %vm1039, %vm1040
    %v1042 = vsel %vm1041, %v1033, %v1038
    %v1043 = vmul.f32 %v1009, %v1032
    %v1044 = vmul.f32 %v1010, %v1042
    %v1045 = vperm.slane %v672, 2
    %v1046 = vmul.f32 %v1043, %v1045
    %v1047 = vmul.f32 %v1044, %v1045
    %v1048 = vperm.slane %v672, 3
    %v1049 = vadd.f32 %v1046, %v1048
    %v1050 = vadd.f32 %v1047, %v1048
    %s1051 = scalar_lea.vmem %s6, 32
    %v1052 = vld [vmem:[%s1051] sm:$0xff]
    %v1053 = vld [vmem:[%s1051 + $0x8] sm:$0xff]
    %v1054 = vld [vmem:[%s1051 + $0x10] sm:$0xff]
    %v1055 = vld [vmem:[%s1051 + $0x18] sm:$0xff]
    %s1056 = scalar_lea.vmem %s7, 1
    %v1057 = vld [vmem:[%s1056] sm:$0x1]
    %v1059 = vperm.slane %v1057, 0
    %v1062 = vsel %vm150, %v1049, 0
    %v1065 = vsel %vm150, %v1050, 0
    %1067 = vmatpush.msra.mxu0 0.0
    %1068 = vmatpush.msra.mxu0 0.0
    %1069 = vmatpush.msra.mxu0 0.0
    %1070 = vmatpush.msra.mxu0 0.0
    %1071 = vmatpush.msra.mxu0 0.0
    %1072 = vmatpush.msra.mxu0 0.0
    %1073 = vmatpush.msra.mxu0 0.0
    %1074 = vmatpush.msra.mxu0 0.0
    %1075 = vmatpush.msra.mxu0 0.0
    %1076 = vmatpush.msra.mxu0 0.0
    %1077 = vmatpush.msra.mxu0 0.0
    %1078 = vmatpush.msra.mxu0 0.0
    %1079 = vmatpush.msra.mxu0 %v1055
    %1080 = vmatpush.msra.mxu0 %v1054
    %1081 = vmatpush.msra.mxu0 %v1053
    %1082 = vmatpush.msra.mxu0 %v1052
    %1083 = vmatmul.f32.gmra.mxu0 %v1062
    %v1084 = vpop.f32.mrf.mxu0
    %v1085 = vadd.f32 %v1059, %v1084
    %1086 = vmatmul.f32.gmra.mxu0 %v1065
    %v1087 = vpop.f32.mrf.mxu0
    %v1088 = vadd.f32 %v1059, %v1087
    %1089 = vdwg.mxu0
    %v1090 = vmul.f32 %v1085, 0.5
    %v1091 = vmul.f32 %v1088, 0.5
    %v1092 = vmul.f32 %v1085, 0.044715
    %v1093 = vmul.f32 %v1088, 0.044715
    %v1094 = vmul.f32 %v1092, %v1085
    %v1095 = vmul.f32 %v1093, %v1088
    %v1096 = vmul.f32 %v1094, %v1085
    %v1097 = vmul.f32 %v1095, %v1088
    %v1098 = vadd.f32 %v1085, %v1096
    %v1099 = vadd.f32 %v1088, %v1097
    %v1100 = vmul.f32 %v1098, 0.7978846
    %v1101 = vmul.f32 %v1099, 0.7978846
    %v1102 = vtanh.pop %v1100
    %v1103 = vtanh.pop %v1101
    %v1104 = vadd.f32 %v1102, 1.0
    %v1105 = vadd.f32 %v1103, 1.0
    %v1106 = vmul.f32 %v1090, %v1104
    %v1107 = vmul.f32 %v1091, %v1105
    %s1108 = scalar_lea.vmem %s8, 128
    %v1109 = vld [vmem:[%s1108] sm:$0xff]
    %v1110 = vld [vmem:[%s1108 + $0x8] sm:$0xff]
    %v1111 = vld [vmem:[%s1108 + $0x10] sm:$0xff]
    %v1112 = vld [vmem:[%s1108 + $0x18] sm:$0xff]
    %v1113 = vld [vmem:[%s1108 + $0x20] sm:$0xff]
    %v1114 = vld [vmem:[%s1108 + $0x28] sm:$0xff]
    %v1115 = vld [vmem:[%s1108 + $0x30] sm:$0xff]
    %v1116 = vld [vmem:[%s1108 + $0x38] sm:$0xff]
    %v1117 = vld [vmem:[%s1108 + $0x40] sm:$0xff]
    %v1118 = vld [vmem:[%s1108 + $0x48] sm:$0xff]
    %v1119 = vld [vmem:[%s1108 + $0x50] sm:$0xff]
    %v1120 = vld [vmem:[%s1108 + $0x58] sm:$0xff]
    %v1121 = vld [vmem:[%s1108 + $0x60] sm:$0xff]
    %v1122 = vld [vmem:[%s1108 + $0x68] sm:$0xff]
    %v1123 = vld [vmem:[%s1108 + $0x70] sm:$0xff]
    %v1124 = vld [vmem:[%s1108 + $0x78] sm:$0xff]
    %v1125 = vperm.slane %v672, 5
    %1126 = vmatpush.msra.mxu0 %v1124
    %1127 = vmatpush.msra.mxu0 %v1123
    %1128 = vmatpush.msra.mxu0 %v1122
    %1129 = vmatpush.msra.mxu0 %v1121
    %1130 = vmatpush.msra.mxu0 %v1120
    %1131 = vmatpush.msra.mxu0 %v1119
    %1132 = vmatpush.msra.mxu0 %v1118
    %1133 = vmatpush.msra.mxu0 %v1117
    %1134 = vmatpush.msra.mxu0 %v1116
    %1135 = vmatpush.msra.mxu0 %v1115
    %1136 = vmatpush.msra.mxu0 %v1114
    %1137 = vmatpush.msra.mxu0 %v1113
    %1138 = vmatpush.msra.mxu0 %v1112
    %1139 = vmatpush.msra.mxu0 %v1111
    %1140 = vmatpush.msra.mxu0 %v1110
    %1141 = vmatpush.msra.mxu0 %v1109
    %1142 = vmatmul.f32.gmra.mxu0 %v1106
    %v1143 = vpop.f32.mrf.mxu0
    %v1144 = vadd.f32 %v1125, %v1143
    %1145 = vmatmul.f32.gmra.mxu0 %v1107
    %v1146 = vpop.f32.mrf.mxu0
    %1147 = vdwg.mxu0
    %v1148 = vadd.f32 %v999, %v1144
    %v1149 = vld [vmem:[%s10] sm:$0x3]
    %v1151 = vrot.slane %v1148, 4
    %vm1153 = vcmask 1040384
    %v1154 = vsel %vm1153, %v1148, %v1151
    %v1155 = vsel %vm154, %v1154, 0.0
    %1156 = vadd.xlane.f32.xlu0 %v1155
    %v1157 = vpop.xlane.xlu0 %1156
    %v1158 = vmul.f32 %v1157, %v164
    %v1159 = vsub.f32 %v1154, %v1158
    %v1160 = vmul.f32 %v1159, %v1159
    %v1161 = vsel %vm154, %v1160, 0.0
    %1162 = vadd.xlane.f32.xlu0 %v1161
    %v1163 = vpop.xlane.xlu0 %1162
    %v1164 = vmul.f32 %v1163, %v164
    %v1165 = vadd.f32 %v1164, 1e-06
    %v1166 = vrsqrt.pop %v1165
    %v1167 = vmul.f32 %v1166, %v1165
    %v1168 = vmul.f32 %v1167, %v1166
    %v1169 = vmul.f32 0.5, %v1168
    %v1170 = vsub.f32 1.5, %v1169
    %v1171 = vmul.f32 %v1166, %v1170
    %vm1172 = vweird.f32 %v1165
    %vm1173 = vweird.f32 %v1166
    %vm1174 = vmor %vm1172, %vm1173
    %v1175 = vsel %vm1174, %v1166, %v1171
    %v1176 = vmul.f32 %v1159, %v1175
    %v1177 = vperm.slane %v1149, 0
    %v1178 = vmul.f32 %v1176, %v1177
    %v1179 = vperm.slane %v1149, 1
    %v1180 = vadd.f32 %v1178, %v1179
    %v1181 = vld [vmem:[%s11] sm:$0xff]
    %v1182 = vld [vmem:[%s11 + $0x8] sm:$0xff]
    %v1183 = vld [vmem:[%s11 + $0x10] sm:$0xff]
    %v1184 = vld [vmem:[%s11 + $0x18] sm:$0xff]
    %v1185 = vld [vmem:[%s12] sm:$0x1]
    %v1187 = vperm.slane %v1185, 0
    %v1190 = vsel %vm150, %v1180, 0
    %1192 = vmatpush.msra.mxu0 0.0
    %1193 = vmatpush.msra.mxu0 0.0
    %1194 = vmatpush.msra.mxu0 0.0
    %1195 = vmatpush.msra.mxu0 0.0
    %1196 = vmatpush.msra.mxu0 0.0
    %1197 = vmatpush.msra.mxu0 0.0
    %1198 = vmatpush.msra.mxu0 0.0
    %1199 = vmatpush.msra.mxu0 0.0
    %1200 = vmatpush.msra.mxu0 0.0
    %1201 = vmatpush.msra.mxu0 0.0
    %1202 = vmatpush.msra.mxu0 0.0
    %1203 = vmatpush.msra.mxu0 0.0
    %1204 = vmatpush.msra.mxu0 %v1184
    %1205 = vmatpush.msra.mxu0 %v1183
    %1206 = vmatpush.msra.mxu0 %v1182
    %1207 = vmatpush.msra.mxu0 %v1181
    %1208 = vmatmul.f32.gmra.mxu0 %v1190
    %v1209 = vpop.f32.mrf.mxu0
    %v1210 = vadd.f32 %v1187, %v1209
    %1211 = vdwg.mxu0
    %1212 = vst [vmem:[#allocation2] sm:$0x3] %v1210
    // Predicated region
    $region66: #{vit_forward.1} parent=1 // pred_check
      _
    $region67: #{vit_forward.1} parent=1 // pred_check_branch
      %1214 = sbr.rel (0) target = $region69
    $region68: #{vit_forward.1} parent=1 // pred_region
      %1216 = vsyncadd [#allocation3], 0
      %s1218 = sshll.u32 [#allocation2], 4
      %s1219 = int_to_ptr.vmem [resolvable:$true] %s1218
      %s1220 = sshll.u32 %s16, 4
      %s1221 = int_to_ptr.hbm [resolvable:$true] %s1220
      %1223 = dma.vmem_to_hbm [thread:$0]  %s1219, 32, %s1221, [#allocation3]
    $region69: #{vit_forward.1} parent=1 // pred_fallthru
      _
    // Predicated region
    $region70: #{vit_forward.1} parent=1 // pred_check
      _
    $region71: #{vit_forward.1} parent=1 // pred_check_branch
      %1225 = sbr.rel (0) target = $region73
    $region72: #{vit_forward.1} parent=1 // pred_region
      %1227 = dma.done [#allocation3], 32
    $region73: #{vit_forward.1} parent=1 // pred_fallthru
      _
    %1228 = vsyncpa [#allocation3], 1

</llo_original>
